<compile_context>
chip_gen: v7x
topology: tpu7x:2x2x1
jax: 0.10.0
libtpu: 0.0.40
codegen_flags: <defaults>
</compile_context>

<pallas_src>
import math
import functools

import jax
import jax.numpy as jnp
from jax import lax
from jax.experimental import pallas as pl
from jax.experimental.pallas import tpu as pltpu


def _mha_kernel(batch, seq, num_heads, head_dim,
                xq_ref, xk_ref, xv_ref,
                wq_ref, bq_ref, wk_ref, bk_ref, wv_ref, bv_ref,
                wo_ref, bo_ref,
                out_ref, attw_ref):
    """Single fused invocation; the whole (tiny) problem lives in VMEM.

    xq/xk/xv refs: (B*S, E) bf16 (batch flattened into the matmul M dim).
    w*_refs: (E, E) bf16 (cast once in the wrapper). b*_refs: (1, E) f32.
    out_ref: (B*S, E) f32.
    attw_ref: (S, B*H*S) f32 -- per-(batch, head) (S,S) weight tiles packed
      along the lane axis so the output is one block instead of B*H padded
      (8,128) tiles; the wrapper reshapes/transposes back to (B, H, S, S).
    """
    B, S, H, D = batch, seq, num_heads, head_dim
    E = wo_ref.shape[1]
    inv_sqrt_d = 1.0 / math.sqrt(D)

    # Q/K/V projections on the flattened (B*S, E) activations: better MXU row
    # fill (B*S rows instead of S) and one matmul per projection. f32
    # accumulation; the 1/sqrt(d) scale is folded into q once (cheaper than
    # scaling every (S,S) score tile).
    q = (jnp.dot(xq_ref[...], wq_ref[...],
                 preferred_element_type=jnp.float32) + bq_ref[...]) * inv_sqrt_d
    k = jnp.dot(xk_ref[...], wk_ref[...],
                preferred_element_type=jnp.float32) + bk_ref[...]
    v = jnp.dot(xv_ref[...], wv_ref[...],
                preferred_element_type=jnp.float32) + bv_ref[...]
    q = q.astype(jnp.bfloat16)
    k = k.astype(jnp.bfloat16)
    v = v.astype(jnp.bfloat16)

    # q @ k^T with the transpose folded into dot_general (no XLU vxpose).
    contract_last = (((1,), (1,)), ((), ()))

    # TODO(synk): at realistic (S, D) this becomes a flash-style tiled grid
    # with online softmax and head-batched dot_general (see header).
    for b in range(B):                              # static, unrolled
        row_lo = b * S
        # Per-batch f32 accumulator for the output projection; each head is
        # folded in immediately, so no (S, E) concat slab is needed.
        acc = jnp.zeros((S, E), dtype=jnp.float32)
        for h in range(H):                          # static, unrolled (H small)
            lo = h * D
            hi = lo + D
            qh = q[row_lo:row_lo + S, lo:hi]        # (S, D) bf16
            kh = k[row_lo:row_lo + S, lo:hi]
            vh = v[row_lo:row_lo + S, lo:hi]

            scores = lax.dot_general(qh, kh, contract_last,
                                     preferred_element_type=jnp.float32)  # (S,S) f32
            # TODO(synk): optional mask (mask==0 -> -1e9) not implemented; the
            # module is exercised with mask=None.

            # Softmax in f32 (VPU/EUP); the normalizer uses the EUP vrcp
            # (approx=True) -- that slot is otherwise idle here.
            scores_max = jnp.max(scores, axis=-1, keepdims=True)
            e = jnp.exp(scores - scores_max)
            denom = jnp.sum(e, axis=-1, keepdims=True)
            w = e * pl.reciprocal(denom, approx=True)        # (S, S) weights

            # Pack this (b, h) weight tile into the lane-packed output slab.
            col = (b * H + h) * S
            attw_ref[:, col:col + S] = w

            # Fold the head's context straight into the output projection.
            ctx = jnp.dot(w.astype(jnp.bfloat16), vh,
                          preferred_element_type=jnp.float32)            # (S, D)
            acc = acc + jnp.dot(ctx.astype(jnp.bfloat16), wo_ref[lo:hi, :],
                                preferred_element_type=jnp.float32)      # (S, E)

        out_ref[row_lo:row_lo + S, :] = acc + bo_ref[...]


def multi_head_attention(xq, xk, xv, params, num_heads):
    """xq/xk/xv: (B, S, E) float32. Returns (out (B,S,E), attn_weights (B,H,S,S))."""
    B, S, E = xq.shape
    assert E % num_heads == 0
    D = E // num_heads
    H = num_heads

    wq, bq, wk, bk, wv, bv, wo, bo = params

    # One-time wrapper-side prep (pure layout / dtype plumbing, done by XLA):
    #  * flatten batch into the matmul M dim,
    #  * cast all matmul operands to bf16 once (halves HBM->VMEM DMA bytes and
    #    removes per-invocation convert ops); biases stay f32.
    xq_f = xq.reshape(B * S, E).astype(jnp.bfloat16)
    xk_f = xk.reshape(B * S, E).astype(jnp.bfloat16)
    xv_f = xv.reshape(B * S, E).astype(jnp.bfloat16)
    wq_b, wk_b, wv_b, wo_b = (w.astype(jnp.bfloat16) for w in (wq, wk, wv, wo))

    kernel = functools.partial(_mha_kernel, B, S, H, D)

    # Advisory cost estimate so XLA schedules around the custom call sensibly.
    flops = 4 * 2 * B * S * E * E + 2 * B * H * (2 * S * S * D)
    transcendentals = B * H * S * S
    bytes_accessed = (2 * 3 * B * S * E            # bf16 activations in
                      + 2 * 4 * E * E + 4 * 4 * E  # bf16 weights + f32 biases
                      + 4 * B * S * E              # f32 output
                      + 4 * B * H * S * S)         # f32 attention weights
    cost = pl.CostEstimate(flops=flops, transcendentals=transcendentals,
                           bytes_accessed=bytes_accessed)

    vmem_spec = pl.BlockSpec(memory_space=pltpu.MemorySpace.VMEM)

    # Single fused invocation: no grid. On single-TensorCore parts (v5e/v6e) a
    # grid over batch is just a serial loop whose ~0.35us/step overhead dwarfs
    # this much compute. For larger batches on v7x, reintroduce a leading
    # "parallel"/CORE_PARALLEL grid axis of size 2 to feed both TensorCores and
    # put the rest of the batch in the block.
    out_flat, attw_packed = pl.pallas_call(
        kernel,
        out_shape=(
            jax.ShapeDtypeStruct((B * S, E), jnp.float32),
            jax.ShapeDtypeStruct((S, B * H * S), jnp.float32),
        ),
        in_specs=[vmem_spec] * 11,
        out_specs=(vmem_spec, vmem_spec),
        compiler_params=pltpu.CompilerParams(
            # v7x-safe budget; raise toward 64-100 MiB on v5e/v6e when this is
            # re-tiled (flash-style) for realistic sequence lengths.
            vmem_limit_bytes=32 * 1024 * 1024,
        ),
        cost_estimate=cost,
    )(xq_f, xk_f, xv_f, wq_b, bq, wk_b, bk, wv_b, bv, wo_b, bo)

    out = out_flat.reshape(B, S, E)
    # attw_packed[q, (b*H + h)*S + k] == attw[b, h, q, k]; undo the lane
    # packing outside the kernel (cheap XLA-side layout plumbing).
    attw = attw_packed.reshape(S, B, H, S).transpose(1, 2, 0, 3)
    return out, attw


def _reference(xq, xk, xv, params, num_heads):
    """Plain-JAX f32 reference replicating the PyTorch forward."""
    wq, bq, wk, bk, wv, bv, wo, bo = params
    B, S, E = xq.shape
    D = E // num_heads
    q = xq @ wq + bq[0]
    k = xk @ wk + bk[0]
    v = xv @ wv + bv[0]
    q = q.reshape(B, S, num_heads, D).transpose(0, 2, 1, 3)
    k = k.reshape(B, S, num_heads, D).transpose(0, 2, 1, 3)
    v = v.reshape(B, S, num_heads, D).transpose(0, 2, 1, 3)
    scores = jnp.einsum("bhqd,bhkd->bhqk", q, k) / math.sqrt(D)
    w = jax.nn.softmax(scores, axis=-1)
    o = jnp.einsum("bhqk,bhkd->bhqd", w, v)
    o = o.transpose(0, 2, 1, 3).reshape(B, S, E)
    return o @ wo + bo[0], w


if __name__ == "__main__":
    B, S, E, H = 2, 8, 32, 4   # batch, seq, embed_dim, num_heads

    key = jax.random.PRNGKey(0)
    keys = jax.random.split(key, 12)

    # Inputs (batch, seq, embed_dim)
    xq = jax.random.normal(keys[0], (B, S, E), dtype=jnp.float32)
    xk = jax.random.normal(keys[1], (B, S, E), dtype=jnp.float32)
    xv = jax.random.normal(keys[2], (B, S, E), dtype=jnp.float32)

    # Deterministic parameter init (nn.Linear-shaped; stored as (in, out) so
    # the kernel computes x @ W + b). Scaled like a uniform fan-in init.
    bound = 1.0 / math.sqrt(E)
    def init_linear(kw, kb):
        w = jax.random.uniform(kw, (E, E), jnp.float32, -bound, bound)
        b = jax.random.uniform(kb, (1, E), jnp.float32, -bound, bound)
        return w, b

    wq, bq = init_linear(keys[3], keys[4])
    wk, bk = init_linear(keys[5], keys[6])
    wv, bv = init_linear(keys[7], keys[8])
    wo, bo = init_linear(keys[9], keys[10])
    params = (wq, bq, wk, bk, wv, bv, wo, bo)

    out, attw = multi_head_attention(xq, xk, xv, params, H)
    jax.block_until_ready((out, attw))

    ref_out, ref_w = _reference(xq, xk, xv, params, H)
    assert out.shape == (B, S, E) and attw.shape == (B, H, S, S)
    # Tolerances relaxed vs. the pure-f32 reference because matmul operands are
    # bf16 and the softmax normalizer uses the EUP approximate reciprocal
    # (accumulation and the rest of the softmax stay f32).
    assert jnp.allclose(out, ref_out, atol=2e-2, rtol=2e-2)
    assert jnp.allclose(attw, ref_w, atol=1e-2, rtol=1e-2)

    print("KERNEL_OK")
</pallas_src>

<mosaic_0001>
module attributes {stable_mosaic.version = 11 : i64} {
  func.func @_mha_kernel(%arg0: memref<16x32xbf16, #tpu.memory_space<vmem>>, %arg1: memref<16x32xbf16, #tpu.memory_space<vmem>>, %arg2: memref<16x32xbf16, #tpu.memory_space<vmem>>, %arg3: memref<32x32xbf16, #tpu.memory_space<vmem>>, %arg4: memref<1x32xf32, #tpu.memory_space<vmem>>, %arg5: memref<32x32xbf16, #tpu.memory_space<vmem>>, %arg6: memref<1x32xf32, #tpu.memory_space<vmem>>, %arg7: memref<32x32xbf16, #tpu.memory_space<vmem>>, %arg8: memref<1x32xf32, #tpu.memory_space<vmem>>, %arg9: memref<32x32xbf16, #tpu.memory_space<vmem>>, %arg10: memref<1x32xf32, #tpu.memory_space<vmem>>, %arg11: memref<16x32xf32, #tpu.memory_space<vmem>>, %arg12: memref<8x64xf32, #tpu.memory_space<vmem>>) attributes {dimension_semantics = [], scalar_prefetch = 0 : i64, scratch_operands = 0 : i64, tpu.core_type = #tpu.core_type<tc>} {
    %c0 = arith.constant 0 : index
    %c0_0 = arith.constant 0 : index
    %0 = vector.load %arg0[%c0, %c0_0] : memref<16x32xbf16, #tpu.memory_space<vmem>>, vector<16x32xbf16>
    %c0_1 = arith.constant 0 : index
    %c0_2 = arith.constant 0 : index
    %1 = vector.load %arg3[%c0_1, %c0_2] : memref<32x32xbf16, #tpu.memory_space<vmem>>, vector<32x32xbf16>
    %cst = arith.constant dense<0.000000e+00> : vector<16x32xf32>
    %2 = tpu.matmul %0, %1, %cst {dimension_numbers = #tpu.dot_dimension_numbers<[1], [0], [0], [1], [0, 0, 1, 1], [], []>} : vector<16x32xbf16>, vector<32x32xbf16>, vector<16x32xf32> -> vector<16x32xf32>
    %c0_3 = arith.constant 0 : index
    %c0_4 = arith.constant 0 : index
    %3 = vector.load %arg4[%c0_3, %c0_4] : memref<1x32xf32, #tpu.memory_space<vmem>>, vector<1x32xf32>
    %4 = vector.broadcast %3 : vector<1x32xf32> to vector<16x32xf32>
    %5 = arith.addf %2, %4 : vector<16x32xf32>
    %cst_5 = arith.constant 0.353553385 : f32
    %6 = vector.broadcast %cst_5 : f32 to vector<16x32xf32>
    %7 = arith.mulf %5, %6 : vector<16x32xf32>
    %c0_6 = arith.constant 0 : index
    %c0_7 = arith.constant 0 : index
    %8 = vector.load %arg1[%c0_6, %c0_7] : memref<16x32xbf16, #tpu.memory_space<vmem>>, vector<16x32xbf16>
    %c0_8 = arith.constant 0 : index
    %c0_9 = arith.constant 0 : index
    %9 = vector.load %arg5[%c0_8, %c0_9] : memref<32x32xbf16, #tpu.memory_space<vmem>>, vector<32x32xbf16>
    %cst_10 = arith.constant dense<0.000000e+00> : vector<16x32xf32>
    %10 = tpu.matmul %8, %9, %cst_10 {dimension_numbers = #tpu.dot_dimension_numbers<[1], [0], [0], [1], [0, 0, 1, 1], [], []>} : vector<16x32xbf16>, vector<32x32xbf16>, vector<16x32xf32> -> vector<16x32xf32>
    %c0_11 = arith.constant 0 : index
    %c0_12 = arith.constant 0 : index
    %11 = vector.load %arg6[%c0_11, %c0_12] : memref<1x32xf32, #tpu.memory_space<vmem>>, vector<1x32xf32>
    %12 = vector.broadcast %11 : vector<1x32xf32> to vector<16x32xf32>
    %13 = arith.addf %10, %12 : vector<16x32xf32>
    %c0_13 = arith.constant 0 : index
    %c0_14 = arith.constant 0 : index
    %14 = vector.load %arg2[%c0_13, %c0_14] : memref<16x32xbf16, #tpu.memory_space<vmem>>, vector<16x32xbf16>
    %c0_15 = arith.constant 0 : index
    %c0_16 = arith.constant 0 : index
    %15 = vector.load %arg7[%c0_15, %c0_16] : memref<32x32xbf16, #tpu.memory_space<vmem>>, vector<32x32xbf16>
    %cst_17 = arith.constant dense<0.000000e+00> : vector<16x32xf32>
    %16 = tpu.matmul %14, %15, %cst_17 {dimension_numbers = #tpu.dot_dimension_numbers<[1], [0], [0], [1], [0, 0, 1, 1], [], []>} : vector<16x32xbf16>, vector<32x32xbf16>, vector<16x32xf32> -> vector<16x32xf32>
    %c0_18 = arith.constant 0 : index
    %c0_19 = arith.constant 0 : index
    %17 = vector.load %arg8[%c0_18, %c0_19] : memref<1x32xf32, #tpu.memory_space<vmem>>, vector<1x32xf32>
    %18 = vector.broadcast %17 : vector<1x32xf32> to vector<16x32xf32>
    %19 = arith.addf %16, %18 : vector<16x32xf32>
    %20 = arith.truncf %7 : vector<16x32xf32> to vector<16x32xbf16>
    %21 = arith.truncf %13 : vector<16x32xf32> to vector<16x32xbf16>
    %22 = arith.truncf %19 : vector<16x32xf32> to vector<16x32xbf16>
    %cst_20 = arith.constant 0.000000e+00 : f32
    %23 = vector.broadcast %cst_20 : f32 to vector<8x32xf32>
    %24 = vector.extract_strided_slice %20 {offsets = [0, 0], sizes = [8, 8], strides = [1, 1]} : vector<16x32xbf16> to vector<8x8xbf16>
    %25 = vector.extract_strided_slice %21 {offsets = [0, 0], sizes = [8, 8], strides = [1, 1]} : vector<16x32xbf16> to vector<8x8xbf16>
    %26 = vector.extract_strided_slice %22 {offsets = [0, 0], sizes = [8, 8], strides = [1, 1]} : vector<16x32xbf16> to vector<8x8xbf16>
    %cst_21 = arith.constant dense<0.000000e+00> : vector<8x8xf32>
    %27 = tpu.matmul %24, %25, %cst_21 {dimension_numbers = #tpu.dot_dimension_numbers<[1], [1], [0], [0], [0, 0, 1, 0], [], []>} : vector<8x8xbf16>, vector<8x8xbf16>, vector<8x8xf32> -> vector<8x8xf32>
    %cst_22 = arith.constant dense<0xFF800000> : vector<8xf32>
    %28 = vector.multi_reduction <maximumf>, %27, %cst_22 [1] : vector<8x8xf32> to vector<8xf32>
    %29 = vector.shape_cast %28 : vector<8xf32> to vector<8x1xf32>
    %30 = vector.broadcast %29 : vector<8x1xf32> to vector<8x8xf32>
    %31 = arith.subf %27, %30 : vector<8x8xf32>
    %32 = math.exp %31 : vector<8x8xf32>
    %cst_23 = arith.constant dense<0.000000e+00> : vector<8xf32>
    %33 = vector.multi_reduction <add>, %32, %cst_23 [1] : vector<8x8xf32> to vector<8xf32>
    %34 = vector.shape_cast %33 : vector<8xf32> to vector<8x1xf32>
    %35 = tpu.reciprocal %34 {approx = true} : vector<8x1xf32> -> vector<8x1xf32>
    %36 = vector.broadcast %35 : vector<8x1xf32> to vector<8x8xf32>
    %37 = arith.mulf %32, %36 : vector<8x8xf32>
    %c0_24 = arith.constant 0 : index
    %c0_25 = arith.constant 0 : index
    %38 = vector.load %arg12[%c0_24, %c0_25] : memref<8x64xf32, #tpu.memory_space<vmem>>, vector<8x8xf32>
    tpu.vector_store %arg12[%c0_24, %c0_25], %37 {strides = array<i32>} : memref<8x64xf32, #tpu.memory_space<vmem>>, vector<8x8xf32>,
    %39 = arith.truncf %37 : vector<8x8xf32> to vector<8x8xbf16>
    %cst_26 = arith.constant dense<0.000000e+00> : vector<8x8xf32>
    %40 = tpu.matmul %39, %26, %cst_26 {dimension_numbers = #tpu.dot_dimension_numbers<[1], [0], [0], [1], [0, 0, 1, 1], [], []>} : vector<8x8xbf16>, vector<8x8xbf16>, vector<8x8xf32> -> vector<8x8xf32>
    %41 = arith.truncf %40 : vector<8x8xf32> to vector<8x8xbf16>
    %c0_27 = arith.constant 0 : index
    %c0_28 = arith.constant 0 : index
    %42 = vector.load %arg9[%c0_27, %c0_28] : memref<32x32xbf16, #tpu.memory_space<vmem>>, vector<8x32xbf16>
    %cst_29 = arith.constant dense<0.000000e+00> : vector<8x32xf32>
    %43 = tpu.matmul %41, %42, %cst_29 {dimension_numbers = #tpu.dot_dimension_numbers<[1], [0], [0], [1], [0, 0, 1, 1], [], []>} : vector<8x8xbf16>, vector<8x32xbf16>, vector<8x32xf32> -> vector<8x32xf32>
    %44 = arith.addf %23, %43 : vector<8x32xf32>
    %45 = vector.extract_strided_slice %20 {offsets = [0, 8], sizes = [8, 8], strides = [1, 1]} : vector<16x32xbf16> to vector<8x8xbf16>
    %46 = vector.extract_strided_slice %21 {offsets = [0, 8], sizes = [8, 8], strides = [1, 1]} : vector<16x32xbf16> to vector<8x8xbf16>
    %47 = vector.extract_strided_slice %22 {offsets = [0, 8], sizes = [8, 8], strides = [1, 1]} : vector<16x32xbf16> to vector<8x8xbf16>
    %cst_30 = arith.constant dense<0.000000e+00> : vector<8x8xf32>
    %48 = tpu.matmul %45, %46, %cst_30 {dimension_numbers = #tpu.dot_dimension_numbers<[1], [1], [0], [0], [0, 0, 1, 0], [], []>} : vector<8x8xbf16>, vector<8x8xbf16>, vector<8x8xf32> -> vector<8x8xf32>
    %cst_31 = arith.constant dense<0xFF800000> : vector<8xf32>
    %49 = vector.multi_reduction <maximumf>, %48, %cst_31 [1] : vector<8x8xf32> to vector<8xf32>
    %50 = vector.shape_cast %49 : vector<8xf32> to vector<8x1xf32>
    %51 = vector.broadcast %50 : vector<8x1xf32> to vector<8x8xf32>
    %52 = arith.subf %48, %51 : vector<8x8xf32>
    %53 = math.exp %52 : vector<8x8xf32>
    %cst_32 = arith.constant dense<0.000000e+00> : vector<8xf32>
    %54 = vector.multi_reduction <add>, %53, %cst_32 [1] : vector<8x8xf32> to vector<8xf32>
    %55 = vector.shape_cast %54 : vector<8xf32> to vector<8x1xf32>
    %56 = tpu.reciprocal %55 {approx = true} : vector<8x1xf32> -> vector<8x1xf32>
    %57 = vector.broadcast %56 : vector<8x1xf32> to vector<8x8xf32>
    %58 = arith.mulf %53, %57 : vector<8x8xf32>
    %c0_33 = arith.constant 0 : index
    %c8 = arith.constant 8 : index
    %59 = vector.load %arg12[%c0_33, %c8] : memref<8x64xf32, #tpu.memory_space<vmem>>, vector<8x8xf32>
    tpu.vector_store %arg12[%c0_33, %c8], %58 {strides = array<i32>} : memref<8x64xf32, #tpu.memory_space<vmem>>, vector<8x8xf32>,
    %60 = arith.truncf %58 : vector<8x8xf32> to vector<8x8xbf16>
    %cst_34 = arith.constant dense<0.000000e+00> : vector<8x8xf32>
    %61 = tpu.matmul %60, %47, %cst_34 {dimension_numbers = #tpu.dot_dimension_numbers<[1], [0], [0], [1], [0, 0, 1, 1], [], []>} : vector<8x8xbf16>, vector<8x8xbf16>, vector<8x8xf32> -> vector<8x8xf32>
    %62 = arith.truncf %61 : vector<8x8xf32> to vector<8x8xbf16>
    %c8_35 = arith.constant 8 : index
    %c0_36 = arith.constant 0 : index
    %63 = vector.load %arg9[%c8_35, %c0_36] : memref<32x32xbf16, #tpu.memory_space<vmem>>, vector<8x32xbf16>
    %cst_37 = arith.constant dense<0.000000e+00> : vector<8x32xf32>
    %64 = tpu.matmul %62, %63, %cst_37 {dimension_numbers = #tpu.dot_dimension_numbers<[1], [0], [0], [1], [0, 0, 1, 1], [], []>} : vector<8x8xbf16>, vector<8x32xbf16>, vector<8x32xf32> -> vector<8x32xf32>
    %65 = arith.addf %44, %64 : vector<8x32xf32>
    %66 = vector.extract_strided_slice %20 {offsets = [0, 16], sizes = [8, 8], strides = [1, 1]} : vector<16x32xbf16> to vector<8x8xbf16>
    %67 = vector.extract_strided_slice %21 {offsets = [0, 16], sizes = [8, 8], strides = [1, 1]} : vector<16x32xbf16> to vector<8x8xbf16>
    %68 = vector.extract_strided_slice %22 {offsets = [0, 16], sizes = [8, 8], strides = [1, 1]} : vector<16x32xbf16> to vector<8x8xbf16>
    %cst_38 = arith.constant dense<0.000000e+00> : vector<8x8xf32>
    %69 = tpu.matmul %66, %67, %cst_38 {dimension_numbers = #tpu.dot_dimension_numbers<[1], [1], [0], [0], [0, 0, 1, 0], [], []>} : vector<8x8xbf16>, vector<8x8xbf16>, vector<8x8xf32> -> vector<8x8xf32>
    %cst_39 = arith.constant dense<0xFF800000> : vector<8xf32>
    %70 = vector.multi_reduction <maximumf>, %69, %cst_39 [1] : vector<8x8xf32> to vector<8xf32>
    %71 = vector.shape_cast %70 : vector<8xf32> to vector<8x1xf32>
    %72 = vector.broadcast %71 : vector<8x1xf32> to vector<8x8xf32>
    %73 = arith.subf %69, %72 : vector<8x8xf32>
    %74 = math.exp %73 : vector<8x8xf32>
    %cst_40 = arith.constant dense<0.000000e+00> : vector<8xf32>
    %75 = vector.multi_reduction <add>, %74, %cst_40 [1] : vector<8x8xf32> to vector<8xf32>
    %76 = vector.shape_cast %75 : vector<8xf32> to vector<8x1xf32>
    %77 = tpu.reciprocal %76 {approx = true} : vector<8x1xf32> -> vector<8x1xf32>
    %78 = vector.broadcast %77 : vector<8x1xf32> to vector<8x8xf32>
    %79 = arith.mulf %74, %78 : vector<8x8xf32>
    %c0_41 = arith.constant 0 : index
    %c16 = arith.constant 16 : index
    %80 = vector.load %arg12[%c0_41, %c16] : memref<8x64xf32, #tpu.memory_space<vmem>>, vector<8x8xf32>
    tpu.vector_store %arg12[%c0_41, %c16], %79 {strides = array<i32>} : memref<8x64xf32, #tpu.memory_space<vmem>>, vector<8x8xf32>,
    %81 = arith.truncf %79 : vector<8x8xf32> to vector<8x8xbf16>
    %cst_42 = arith.constant dense<0.000000e+00> : vector<8x8xf32>
    %82 = tpu.matmul %81, %68, %cst_42 {dimension_numbers = #tpu.dot_dimension_numbers<[1], [0], [0], [1], [0, 0, 1, 1], [], []>} : vector<8x8xbf16>, vector<8x8xbf16>, vector<8x8xf32> -> vector<8x8xf32>
    %83 = arith.truncf %82 : vector<8x8xf32> to vector<8x8xbf16>
    %c16_43 = arith.constant 16 : index
    %c0_44 = arith.constant 0 : index
    %84 = vector.load %arg9[%c16_43, %c0_44] : memref<32x32xbf16, #tpu.memory_space<vmem>>, vector<8x32xbf16>
    %cst_45 = arith.constant dense<0.000000e+00> : vector<8x32xf32>
    %85 = tpu.matmul %83, %84, %cst_45 {dimension_numbers = #tpu.dot_dimension_numbers<[1], [0], [0], [1], [0, 0, 1, 1], [], []>} : vector<8x8xbf16>, vector<8x32xbf16>, vector<8x32xf32> -> vector<8x32xf32>
    %86 = arith.addf %65, %85 : vector<8x32xf32>
    %87 = vector.extract_strided_slice %20 {offsets = [0, 24], sizes = [8, 8], strides = [1, 1]} : vector<16x32xbf16> to vector<8x8xbf16>
    %88 = vector.extract_strided_slice %21 {offsets = [0, 24], sizes = [8, 8], strides = [1, 1]} : vector<16x32xbf16> to vector<8x8xbf16>
    %89 = vector.extract_strided_slice %22 {offsets = [0, 24], sizes = [8, 8], strides = [1, 1]} : vector<16x32xbf16> to vector<8x8xbf16>
    %cst_46 = arith.constant dense<0.000000e+00> : vector<8x8xf32>
    %90 = tpu.matmul %87, %88, %cst_46 {dimension_numbers = #tpu.dot_dimension_numbers<[1], [1], [0], [0], [0, 0, 1, 0], [], []>} : vector<8x8xbf16>, vector<8x8xbf16>, vector<8x8xf32> -> vector<8x8xf32>
    %cst_47 = arith.constant dense<0xFF800000> : vector<8xf32>
    %91 = vector.multi_reduction <maximumf>, %90, %cst_47 [1] : vector<8x8xf32> to vector<8xf32>
    %92 = vector.shape_cast %91 : vector<8xf32> to vector<8x1xf32>
    %93 = vector.broadcast %92 : vector<8x1xf32> to vector<8x8xf32>
    %94 = arith.subf %90, %93 : vector<8x8xf32>
    %95 = math.exp %94 : vector<8x8xf32>
    %cst_48 = arith.constant dense<0.000000e+00> : vector<8xf32>
    %96 = vector.multi_reduction <add>, %95, %cst_48 [1] : vector<8x8xf32> to vector<8xf32>
    %97 = vector.shape_cast %96 : vector<8xf32> to vector<8x1xf32>
    %98 = tpu.reciprocal %97 {approx = true} : vector<8x1xf32> -> vector<8x1xf32>
    %99 = vector.broadcast %98 : vector<8x1xf32> to vector<8x8xf32>
    %100 = arith.mulf %95, %99 : vector<8x8xf32>
    %c0_49 = arith.constant 0 : index
    %c24 = arith.constant 24 : index
    %101 = vector.load %arg12[%c0_49, %c24] : memref<8x64xf32, #tpu.memory_space<vmem>>, vector<8x8xf32>
    tpu.vector_store %arg12[%c0_49, %c24], %100 {strides = array<i32>} : memref<8x64xf32, #tpu.memory_space<vmem>>, vector<8x8xf32>,
    %102 = arith.truncf %100 : vector<8x8xf32> to vector<8x8xbf16>
    %cst_50 = arith.constant dense<0.000000e+00> : vector<8x8xf32>
    %103 = tpu.matmul %102, %89, %cst_50 {dimension_numbers = #tpu.dot_dimension_numbers<[1], [0], [0], [1], [0, 0, 1, 1], [], []>} : vector<8x8xbf16>, vector<8x8xbf16>, vector<8x8xf32> -> vector<8x8xf32>
    %104 = arith.truncf %103 : vector<8x8xf32> to vector<8x8xbf16>
    %c24_51 = arith.constant 24 : index
    %c0_52 = arith.constant 0 : index
    %105 = vector.load %arg9[%c24_51, %c0_52] : memref<32x32xbf16, #tpu.memory_space<vmem>>, vector<8x32xbf16>
    %cst_53 = arith.constant dense<0.000000e+00> : vector<8x32xf32>
    %106 = tpu.matmul %104, %105, %cst_53 {dimension_numbers = #tpu.dot_dimension_numbers<[1], [0], [0], [1], [0, 0, 1, 1], [], []>} : vector<8x8xbf16>, vector<8x32xbf16>, vector<8x32xf32> -> vector<8x32xf32>
    %107 = arith.addf %86, %106 : vector<8x32xf32>
    %c0_54 = arith.constant 0 : index
    %c0_55 = arith.constant 0 : index
    %108 = vector.load %arg10[%c0_54, %c0_55] : memref<1x32xf32, #tpu.memory_space<vmem>>, vector<1x32xf32>
    %109 = vector.broadcast %108 : vector<1x32xf32> to vector<8x32xf32>
    %110 = arith.addf %107, %109 : vector<8x32xf32>
    %c0_56 = arith.constant 0 : index
    %c0_57 = arith.constant 0 : index
    %111 = vector.load %arg11[%c0_56, %c0_57] : memref<16x32xf32, #tpu.memory_space<vmem>>, vector<8x32xf32>
    tpu.vector_store %arg11[%c0_56, %c0_57], %110 {strides = array<i32>} : memref<16x32xf32, #tpu.memory_space<vmem>>, vector<8x32xf32>,
    %cst_58 = arith.constant 0.000000e+00 : f32
    %112 = vector.broadcast %cst_58 : f32 to vector<8x32xf32>
    %113 = vector.extract_strided_slice %20 {offsets = [8, 0], sizes = [8, 8], strides = [1, 1]} : vector<16x32xbf16> to vector<8x8xbf16>
    %114 = vector.extract_strided_slice %21 {offsets = [8, 0], sizes = [8, 8], strides = [1, 1]} : vector<16x32xbf16> to vector<8x8xbf16>
    %115 = vector.extract_strided_slice %22 {offsets = [8, 0], sizes = [8, 8], strides = [1, 1]} : vector<16x32xbf16> to vector<8x8xbf16>
    %cst_59 = arith.constant dense<0.000000e+00> : vector<8x8xf32>
    %116 = tpu.matmul %113, %114, %cst_59 {dimension_numbers = #tpu.dot_dimension_numbers<[1], [1], [0], [0], [0, 0, 1, 0], [], []>} : vector<8x8xbf16>, vector<8x8xbf16>, vector<8x8xf32> -> vector<8x8xf32>
    %cst_60 = arith.constant dense<0xFF800000> : vector<8xf32>
    %117 = vector.multi_reduction <maximumf>, %116, %cst_60 [1] : vector<8x8xf32> to vector<8xf32>
    %118 = vector.shape_cast %117 : vector<8xf32> to vector<8x1xf32>
    %119 = vector.broadcast %118 : vector<8x1xf32> to vector<8x8xf32>
    %120 = arith.subf %116, %119 : vector<8x8xf32>
    %121 = math.exp %120 : vector<8x8xf32>
    %cst_61 = arith.constant dense<0.000000e+00> : vector<8xf32>
    %122 = vector.multi_reduction <add>, %121, %cst_61 [1] : vector<8x8xf32> to vector<8xf32>
    %123 = vector.shape_cast %122 : vector<8xf32> to vector<8x1xf32>
    %124 = tpu.reciprocal %123 {approx = true} : vector<8x1xf32> -> vector<8x1xf32>
    %125 = vector.broadcast %124 : vector<8x1xf32> to vector<8x8xf32>
    %126 = arith.mulf %121, %125 : vector<8x8xf32>
    %c0_62 = arith.constant 0 : index
    %c32 = arith.constant 32 : index
    %127 = vector.load %arg12[%c0_62, %c32] : memref<8x64xf32, #tpu.memory_space<vmem>>, vector<8x8xf32>
    tpu.vector_store %arg12[%c0_62, %c32], %126 {strides = array<i32>} : memref<8x64xf32, #tpu.memory_space<vmem>>, vector<8x8xf32>,
    %128 = arith.truncf %126 : vector<8x8xf32> to vector<8x8xbf16>
    %cst_63 = arith.constant dense<0.000000e+00> : vector<8x8xf32>
    %129 = tpu.matmul %128, %115, %cst_63 {dimension_numbers = #tpu.dot_dimension_numbers<[1], [0], [0], [1], [0, 0, 1, 1], [], []>} : vector<8x8xbf16>, vector<8x8xbf16>, vector<8x8xf32> -> vector<8x8xf32>
    %130 = arith.truncf %129 : vector<8x8xf32> to vector<8x8xbf16>
    %c0_64 = arith.constant 0 : index
    %c0_65 = arith.constant 0 : index
    %131 = vector.load %arg9[%c0_64, %c0_65] : memref<32x32xbf16, #tpu.memory_space<vmem>>, vector<8x32xbf16>
    %cst_66 = arith.constant dense<0.000000e+00> : vector<8x32xf32>
    %132 = tpu.matmul %130, %131, %cst_66 {dimension_numbers = #tpu.dot_dimension_numbers<[1], [0], [0], [1], [0, 0, 1, 1], [], []>} : vector<8x8xbf16>, vector<8x32xbf16>, vector<8x32xf32> -> vector<8x32xf32>
    %133 = arith.addf %112, %132 : vector<8x32xf32>
    %134 = vector.extract_strided_slice %20 {offsets = [8, 8], sizes = [8, 8], strides = [1, 1]} : vector<16x32xbf16> to vector<8x8xbf16>
    %135 = vector.extract_strided_slice %21 {offsets = [8, 8], sizes = [8, 8], strides = [1, 1]} : vector<16x32xbf16> to vector<8x8xbf16>
    %136 = vector.extract_strided_slice %22 {offsets = [8, 8], sizes = [8, 8], strides = [1, 1]} : vector<16x32xbf16> to vector<8x8xbf16>
    %cst_67 = arith.constant dense<0.000000e+00> : vector<8x8xf32>
    %137 = tpu.matmul %134, %135, %cst_67 {dimension_numbers = #tpu.dot_dimension_numbers<[1], [1], [0], [0], [0, 0, 1, 0], [], []>} : vector<8x8xbf16>, vector<8x8xbf16>, vector<8x8xf32> -> vector<8x8xf32>
    %cst_68 = arith.constant dense<0xFF800000> : vector<8xf32>
    %138 = vector.multi_reduction <maximumf>, %137, %cst_68 [1] : vector<8x8xf32> to vector<8xf32>
    %139 = vector.shape_cast %138 : vector<8xf32> to vector<8x1xf32>
    %140 = vector.broadcast %139 : vector<8x1xf32> to vector<8x8xf32>
    %141 = arith.subf %137, %140 : vector<8x8xf32>
    %142 = math.exp %141 : vector<8x8xf32>
    %cst_69 = arith.constant dense<0.000000e+00> : vector<8xf32>
    %143 = vector.multi_reduction <add>, %142, %cst_69 [1] : vector<8x8xf32> to vector<8xf32>
    %144 = vector.shape_cast %143 : vector<8xf32> to vector<8x1xf32>
    %145 = tpu.reciprocal %144 {approx = true} : vector<8x1xf32> -> vector<8x1xf32>
    %146 = vector.broadcast %145 : vector<8x1xf32> to vector<8x8xf32>
    %147 = arith.mulf %142, %146 : vector<8x8xf32>
    %c0_70 = arith.constant 0 : index
    %c40 = arith.constant 40 : index
    %148 = vector.load %arg12[%c0_70, %c40] : memref<8x64xf32, #tpu.memory_space<vmem>>, vector<8x8xf32>
    tpu.vector_store %arg12[%c0_70, %c40], %147 {strides = array<i32>} : memref<8x64xf32, #tpu.memory_space<vmem>>, vector<8x8xf32>,
    %149 = arith.truncf %147 : vector<8x8xf32> to vector<8x8xbf16>
    %cst_71 = arith.constant dense<0.000000e+00> : vector<8x8xf32>
    %150 = tpu.matmul %149, %136, %cst_71 {dimension_numbers = #tpu.dot_dimension_numbers<[1], [0], [0], [1], [0, 0, 1, 1], [], []>} : vector<8x8xbf16>, vector<8x8xbf16>, vector<8x8xf32> -> vector<8x8xf32>
    %151 = arith.truncf %150 : vector<8x8xf32> to vector<8x8xbf16>
    %c8_72 = arith.constant 8 : index
    %c0_73 = arith.constant 0 : index
    %152 = vector.load %arg9[%c8_72, %c0_73] : memref<32x32xbf16, #tpu.memory_space<vmem>>, vector<8x32xbf16>
    %cst_74 = arith.constant dense<0.000000e+00> : vector<8x32xf32>
    %153 = tpu.matmul %151, %152, %cst_74 {dimension_numbers = #tpu.dot_dimension_numbers<[1], [0], [0], [1], [0, 0, 1, 1], [], []>} : vector<8x8xbf16>, vector<8x32xbf16>, vector<8x32xf32> -> vector<8x32xf32>
    %154 = arith.addf %133, %153 : vector<8x32xf32>
    %155 = vector.extract_strided_slice %20 {offsets = [8, 16], sizes = [8, 8], strides = [1, 1]} : vector<16x32xbf16> to vector<8x8xbf16>
    %156 = vector.extract_strided_slice %21 {offsets = [8, 16], sizes = [8, 8], strides = [1, 1]} : vector<16x32xbf16> to vector<8x8xbf16>
    %157 = vector.extract_strided_slice %22 {offsets = [8, 16], sizes = [8, 8], strides = [1, 1]} : vector<16x32xbf16> to vector<8x8xbf16>
    %cst_75 = arith.constant dense<0.000000e+00> : vector<8x8xf32>
    %158 = tpu.matmul %155, %156, %cst_75 {dimension_numbers = #tpu.dot_dimension_numbers<[1], [1], [0], [0], [0, 0, 1, 0], [], []>} : vector<8x8xbf16>, vector<8x8xbf16>, vector<8x8xf32> -> vector<8x8xf32>
    %cst_76 = arith.constant dense<0xFF800000> : vector<8xf32>
    %159 = vector.multi_reduction <maximumf>, %158, %cst_76 [1] : vector<8x8xf32> to vector<8xf32>
    %160 = vector.shape_cast %159 : vector<8xf32> to vector<8x1xf32>
    %161 = vector.broadcast %160 : vector<8x1xf32> to vector<8x8xf32>
    %162 = arith.subf %158, %161 : vector<8x8xf32>
    %163 = math.exp %162 : vector<8x8xf32>
    %cst_77 = arith.constant dense<0.000000e+00> : vector<8xf32>
    %164 = vector.multi_reduction <add>, %163, %cst_77 [1] : vector<8x8xf32> to vector<8xf32>
    %165 = vector.shape_cast %164 : vector<8xf32> to vector<8x1xf32>
    %166 = tpu.reciprocal %165 {approx = true} : vector<8x1xf32> -> vector<8x1xf32>
    %167 = vector.broadcast %166 : vector<8x1xf32> to vector<8x8xf32>
    %168 = arith.mulf %163, %167 : vector<8x8xf32>
    %c0_78 = arith.constant 0 : index
    %c48 = arith.constant 48 : index
    %169 = vector.load %arg12[%c0_78, %c48] : memref<8x64xf32, #tpu.memory_space<vmem>>, vector<8x8xf32>
    tpu.vector_store %arg12[%c0_78, %c48], %168 {strides = array<i32>} : memref<8x64xf32, #tpu.memory_space<vmem>>, vector<8x8xf32>,
    %170 = arith.truncf %168 : vector<8x8xf32> to vector<8x8xbf16>
    %cst_79 = arith.constant dense<0.000000e+00> : vector<8x8xf32>
    %171 = tpu.matmul %170, %157, %cst_79 {dimension_numbers = #tpu.dot_dimension_numbers<[1], [0], [0], [1], [0, 0, 1, 1], [], []>} : vector<8x8xbf16>, vector<8x8xbf16>, vector<8x8xf32> -> vector<8x8xf32>
    %172 = arith.truncf %171 : vector<8x8xf32> to vector<8x8xbf16>
    %c16_80 = arith.constant 16 : index
    %c0_81 = arith.constant 0 : index
    %173 = vector.load %arg9[%c16_80, %c0_81] : memref<32x32xbf16, #tpu.memory_space<vmem>>, vector<8x32xbf16>
    %cst_82 = arith.constant dense<0.000000e+00> : vector<8x32xf32>
    %174 = tpu.matmul %172, %173, %cst_82 {dimension_numbers = #tpu.dot_dimension_numbers<[1], [0], [0], [1], [0, 0, 1, 1], [], []>} : vector<8x8xbf16>, vector<8x32xbf16>, vector<8x32xf32> -> vector<8x32xf32>
    %175 = arith.addf %154, %174 : vector<8x32xf32>
    %176 = vector.extract_strided_slice %20 {offsets = [8, 24], sizes = [8, 8], strides = [1, 1]} : vector<16x32xbf16> to vector<8x8xbf16>
    %177 = vector.extract_strided_slice %21 {offsets = [8, 24], sizes = [8, 8], strides = [1, 1]} : vector<16x32xbf16> to vector<8x8xbf16>
    %178 = vector.extract_strided_slice %22 {offsets = [8, 24], sizes = [8, 8], strides = [1, 1]} : vector<16x32xbf16> to vector<8x8xbf16>
    %cst_83 = arith.constant dense<0.000000e+00> : vector<8x8xf32>
    %179 = tpu.matmul %176, %177, %cst_83 {dimension_numbers = #tpu.dot_dimension_numbers<[1], [1], [0], [0], [0, 0, 1, 0], [], []>} : vector<8x8xbf16>, vector<8x8xbf16>, vector<8x8xf32> -> vector<8x8xf32>
    %cst_84 = arith.constant dense<0xFF800000> : vector<8xf32>
    %180 = vector.multi_reduction <maximumf>, %179, %cst_84 [1] : vector<8x8xf32> to vector<8xf32>
    %181 = vector.shape_cast %180 : vector<8xf32> to vector<8x1xf32>
    %182 = vector.broadcast %181 : vector<8x1xf32> to vector<8x8xf32>
    %183 = arith.subf %179, %182 : vector<8x8xf32>
    %184 = math.exp %183 : vector<8x8xf32>
    %cst_85 = arith.constant dense<0.000000e+00> : vector<8xf32>
    %185 = vector.multi_reduction <add>, %184, %cst_85 [1] : vector<8x8xf32> to vector<8xf32>
    %186 = vector.shape_cast %185 : vector<8xf32> to vector<8x1xf32>
    %187 = tpu.reciprocal %186 {approx = true} : vector<8x1xf32> -> vector<8x1xf32>
    %188 = vector.broadcast %187 : vector<8x1xf32> to vector<8x8xf32>
    %189 = arith.mulf %184, %188 : vector<8x8xf32>
    %c0_86 = arith.constant 0 : index
    %c56 = arith.constant 56 : index
    %190 = vector.load %arg12[%c0_86, %c56] : memref<8x64xf32, #tpu.memory_space<vmem>>, vector<8x8xf32>
    tpu.vector_store %arg12[%c0_86, %c56], %189 {strides = array<i32>} : memref<8x64xf32, #tpu.memory_space<vmem>>, vector<8x8xf32>,
    %191 = arith.truncf %189 : vector<8x8xf32> to vector<8x8xbf16>
    %cst_87 = arith.constant dense<0.000000e+00> : vector<8x8xf32>
    %192 = tpu.matmul %191, %178, %cst_87 {dimension_numbers = #tpu.dot_dimension_numbers<[1], [0], [0], [1], [0, 0, 1, 1], [], []>} : vector<8x8xbf16>, vector<8x8xbf16>, vector<8x8xf32> -> vector<8x8xf32>
    %193 = arith.truncf %192 : vector<8x8xf32> to vector<8x8xbf16>
    %c24_88 = arith.constant 24 : index
    %c0_89 = arith.constant 0 : index
    %194 = vector.load %arg9[%c24_88, %c0_89] : memref<32x32xbf16, #tpu.memory_space<vmem>>, vector<8x32xbf16>
    %cst_90 = arith.constant dense<0.000000e+00> : vector<8x32xf32>
    %195 = tpu.matmul %193, %194, %cst_90 {dimension_numbers = #tpu.dot_dimension_numbers<[1], [0], [0], [1], [0, 0, 1, 1], [], []>} : vector<8x8xbf16>, vector<8x32xbf16>, vector<8x32xf32> -> vector<8x32xf32>
    %196 = arith.addf %175, %195 : vector<8x32xf32>
    %c0_91 = arith.constant 0 : index
    %c0_92 = arith.constant 0 : index
    %197 = vector.load %arg10[%c0_91, %c0_92] : memref<1x32xf32, #tpu.memory_space<vmem>>, vector<1x32xf32>
    %198 = vector.broadcast %197 : vector<1x32xf32> to vector<8x32xf32>
    %199 = arith.addf %196, %198 : vector<8x32xf32>
    %c8_93 = arith.constant 8 : index
    %c0_94 = arith.constant 0 : index
    %200 = vector.load %arg11[%c8_93, %c0_94] : memref<16x32xf32, #tpu.memory_space<vmem>>, vector<8x32xf32>
    tpu.vector_store %arg11[%c8_93, %c0_94], %199 {strides = array<i32>} : memref<16x32xf32, #tpu.memory_space<vmem>>, vector<8x32xf32>,
    return
  }
}

</mosaic_0001>

<llo_original>
// kernel: tpu_custom_call.1
$region0: #{tpu_custom_call.1}
  #allocation0 [shape = 'u32[]', space=smem, size = 0x4, offset = 0x4, fixed_abs, tag = 'smem constant byte address 0x4 - core index']
  #allocation1 [shape = 'u32[144,128]{1,0:T(1,128)}', space=vmem, size = 0x12000, scoped, tag = 'internal scratch']
  %s0 = inlined_call_operand.hbm [shape: bf16[16,32], index: 0, kind: input, shape index: {}]
  %s1 = inlined_call_operand.hbm [shape: bf16[16,32], index: 1, kind: input, shape index: {}]
  %s2 = inlined_call_operand.hbm [shape: bf16[16,32], index: 2, kind: input, shape index: {}]
  %s3 = inlined_call_operand.hbm [shape: bf16[32,32], index: 3, kind: input, shape index: {}]
  %s4 = inlined_call_operand.vmem [shape: f32[1,32], index: 4, kind: input, shape index: {}]
  %s5 = inlined_call_operand.vmem [shape: bf16[32,32], index: 5, kind: input, shape index: {}]
  %s6 = inlined_call_operand.vmem [shape: f32[1,32], index: 6, kind: input, shape index: {}]
  %s7 = inlined_call_operand.hbm [shape: bf16[32,32], index: 7, kind: input, shape index: {}]
  %s8 = inlined_call_operand.hbm [shape: f32[1,32], index: 8, kind: input, shape index: {}]
  %s9 = inlined_call_operand.vmem [shape: bf16[32,32], index: 9, kind: input, shape index: {}]
  %s10 = inlined_call_operand.vmem [shape: f32[1,32], index: 10, kind: input, shape index: {}]
  %s11 = inlined_call_operand.hbm [shape: f32[16,32], index: 11, kind: output, shape index: {0}]
  %s12 = inlined_call_operand.hbm [shape: f32[8,64], index: 12, kind: output, shape index: {1}]
  %13 = xla_tuple %s11, %s12
  %s14 = sld [smem:[#allocation0]]
  $region86: #{tpu_custom_call.1} parent=0
    _
  %s16 = ssub.s32 1, %s14
  %s17 = scalar_select 0, %s16, %s14
  $region1: #{tpu_custom_call.1} parent=0
    #allocation2 [shape = 'u8[4096]{0}', space=vmem, size = 0x1000, scoped, tag = 'input window, operand 0, single buffered']
    #allocation3 [shape = 's32[1]{0}', space=sflag, size = 0x4, scoped, tag = 'scoped memory for tpu_custom_call.1']
    #allocation4 [shape = 's32[1]{0}', space=sflag, size = 0x4, scoped, tag = 'scoped memory for tpu_custom_call.1']
    #allocation5 [shape = 'u8[4096]{0}', space=vmem, size = 0x1000, scoped, tag = 'input window, operand 1, single buffered']
    #allocation6 [shape = 's32[1]{0}', space=sflag, size = 0x4, scoped, tag = 'scoped memory for tpu_custom_call.1']
    #allocation7 [shape = 'u8[4096]{0}', space=vmem, size = 0x1000, scoped, tag = 'input window, operand 2, single buffered']
    #allocation8 [shape = 'u8[8192]{0}', space=vmem, size = 0x2000, scoped, tag = 'input window, operand 3, single buffered']
    #allocation9 [shape = 's32[1]{0}', space=sflag, size = 0x4, scoped, tag = 'scoped memory for tpu_custom_call.1']
    #allocation10 [shape = 'u8[8192]{0}', space=vmem, size = 0x2000, scoped, tag = 'input window, operand 7, single buffered']
    #allocation11 [shape = 'u8[512]{0}', space=vmem, size = 0x400, scoped, tag = 'input window, operand 8, single buffered']
    #allocation12 [shape = 's32[1]{0}', space=sflag, size = 0x4, scoped, tag = 'scoped memory for tpu_custom_call.1']
    #allocation13 [shape = 'u8[8192]{0}', space=vmem, size = 0x2000, scoped, tag = 'output window, operand 0, single buffered']
    #allocation14 [shape = 'u8[4096]{0}', space=vmem, size = 0x1000, scoped, tag = 'output window, operand 1, single buffered']
    #allocation15 [shape = 's32[1]{0}', space=sflag, size = 0x4, scoped, tag = 'scoped memory for tpu_custom_call.1']
    %18 = vsyncpa [#allocation3], 0
    %19 = vsyncpa [#allocation6], 0
    %20 = vsyncpa [#allocation9], 0
    %21 = vsyncpa [#allocation12], 0
    %22 = vsyncpa [#allocation4], 0
    %23 = vsyncpa [#allocation15], 0
    // Predicated region
    $region2: #{tpu_custom_call.1} parent=1 // pred_check
      _
    $region3: #{tpu_custom_call.1} parent=1 // pred_check_branch
      %25 = sbr.rel (0) target = $region5
    $region4: #{tpu_custom_call.1} parent=1 // pred_region
      %s27 = ssub.s32 128, 128
      %28 = vsyncadd [#allocation3], %s27
      %s29 = sshll.u32 [#allocation2], 4
      %s30 = int_to_ptr.vmem [resolvable:$true] %s29
      %35 = dma.hbm_to_vmem [thread:$0]  %s0, 128, %s30, [#allocation3], 64, 64, 4
    $region5: #{tpu_custom_call.1} parent=1 // pred_fallthru
      _
    // Predicated region
    $region6: #{tpu_custom_call.1} parent=1 // pred_check
      _
    $region7: #{tpu_custom_call.1} parent=1 // pred_check_branch
      %37 = sbr.rel (0) target = $region9
    $region8: #{tpu_custom_call.1} parent=1 // pred_region
      %s39 = ssub.s32 128, 128
      %40 = vsyncadd [#allocation6], %s39
      %s41 = sshll.u32 [#allocation5], 4
      %s42 = int_to_ptr.vmem [resolvable:$true] %s41
      %47 = dma.hbm_to_vmem [thread:$0]  %s1, 128, %s42, [#allocation6], 64, 64, 4
    $region9: #{tpu_custom_call.1} parent=1 // pred_fallthru
      _
    // Predicated region
    $region10: #{tpu_custom_call.1} parent=1 // pred_check
      _
    $region11: #{tpu_custom_call.1} parent=1 // pred_check_branch
      %49 = sbr.rel (0) target = $region13
    $region12: #{tpu_custom_call.1} parent=1 // pred_region
      %s51 = ssub.s32 128, 128
      %52 = vsyncadd [#allocation6], %s51
      %s53 = sshll.u32 [#allocation7], 4
      %s54 = int_to_ptr.vmem [resolvable:$true] %s53
      %59 = dma.hbm_to_vmem [thread:$0]  %s2, 128, %s54, [#allocation6], 64, 64, 4
    $region13: #{tpu_custom_call.1} parent=1 // pred_fallthru
      _
    // Predicated region
    $region14: #{tpu_custom_call.1} parent=1 // pred_check
      _
    $region15: #{tpu_custom_call.1} parent=1 // pred_check_branch
      %61 = sbr.rel (0) target = $region17
    $region16: #{tpu_custom_call.1} parent=1 // pred_region
      %s63 = ssub.s32 256, 256
      %64 = vsyncadd [#allocation9], %s63
      %s65 = sshll.u32 [#allocation8], 4
      %s66 = int_to_ptr.vmem [resolvable:$true] %s65
      %71 = dma.hbm_to_vmem [thread:$0]  %s3, 256, %s66, [#allocation9], 64, 64, 4
    $region17: #{tpu_custom_call.1} parent=1 // pred_fallthru
      _
    // Predicated region
    $region18: #{tpu_custom_call.1} parent=1 // pred_check
      _
    $region19: #{tpu_custom_call.1} parent=1 // pred_check_branch
      %73 = sbr.rel (0) target = $region21
    $region20: #{tpu_custom_call.1} parent=1 // pred_region
      _
    $region21: #{tpu_custom_call.1} parent=1 // pred_fallthru
      _
    // Predicated region
    $region22: #{tpu_custom_call.1} parent=1 // pred_check
      _
    $region23: #{tpu_custom_call.1} parent=1 // pred_check_branch
      %75 = sbr.rel (0) target = $region25
    $region24: #{tpu_custom_call.1} parent=1 // pred_region
      _
    $region25: #{tpu_custom_call.1} parent=1 // pred_fallthru
      _
    // Predicated region
    $region26: #{tpu_custom_call.1} parent=1 // pred_check
      _
    $region27: #{tpu_custom_call.1} parent=1 // pred_check_branch
      %77 = sbr.rel (0) target = $region29
    $region28: #{tpu_custom_call.1} parent=1 // pred_region
      _
    $region29: #{tpu_custom_call.1} parent=1 // pred_fallthru
      _
    // Predicated region
    $region30: #{tpu_custom_call.1} parent=1 // pred_check
      _
    $region31: #{tpu_custom_call.1} parent=1 // pred_check_branch
      %79 = sbr.rel (0) target = $region33
    $region32: #{tpu_custom_call.1} parent=1 // pred_region
      %s81 = ssub.s32 256, 256
      %82 = vsyncadd [#allocation9], %s81
      %s83 = sshll.u32 [#allocation10], 4
      %s84 = int_to_ptr.vmem [resolvable:$true] %s83
      %89 = dma.hbm_to_vmem [thread:$0]  %s7, 256, %s84, [#allocation9], 64, 64, 4
    $region33: #{tpu_custom_call.1} parent=1 // pred_fallthru
      _
    // Predicated region
    $region34: #{tpu_custom_call.1} parent=1 // pred_check
      _
    $region35: #{tpu_custom_call.1} parent=1 // pred_check_branch
      %91 = sbr.rel (0) target = $region37
    $region36: #{tpu_custom_call.1} parent=1 // pred_region
      %s93 = ssub.s32 16, 16
      %94 = vsyncadd [#allocation12], %s93
      %s96 = sshll.u32 [#allocation11], 4
      %s97 = int_to_ptr.vmem [resolvable:$true] %s96
      %99 = dma.hbm_to_vmem [thread:$0]  %s8, 16, %s97, [#allocation12]
    $region37: #{tpu_custom_call.1} parent=1 // pred_fallthru
      _
    // Predicated region
    $region38: #{tpu_custom_call.1} parent=1 // pred_check
      _
    $region39: #{tpu_custom_call.1} parent=1 // pred_check_branch
      %101 = sbr.rel (0) target = $region41
    $region40: #{tpu_custom_call.1} parent=1 // pred_region
      _
    $region41: #{tpu_custom_call.1} parent=1 // pred_fallthru
      _
    // Predicated region
    $region42: #{tpu_custom_call.1} parent=1 // pred_check
      _
    $region43: #{tpu_custom_call.1} parent=1 // pred_check_branch
      %103 = sbr.rel (0) target = $region45
    $region44: #{tpu_custom_call.1} parent=1 // pred_region
      _
    $region45: #{tpu_custom_call.1} parent=1 // pred_fallthru
      _
    // Predicated region
    $region46: #{tpu_custom_call.1} parent=1 // pred_check
      _
    $region47: #{tpu_custom_call.1} parent=1 // pred_check_branch
      %105 = sbr.rel (0) target = $region49
    $region48: #{tpu_custom_call.1} parent=1 // pred_region
      %106 = dma.done [#allocation3], 128
    $region49: #{tpu_custom_call.1} parent=1 // pred_fallthru
      _
    // Predicated region
    $region50: #{tpu_custom_call.1} parent=1 // pred_check
      _
    $region51: #{tpu_custom_call.1} parent=1 // pred_check_branch
      %108 = sbr.rel (0) target = $region53
    $region52: #{tpu_custom_call.1} parent=1 // pred_region
      %109 = dma.done [#allocation6], 128
    $region53: #{tpu_custom_call.1} parent=1 // pred_fallthru
      _
    // Predicated region
    $region54: #{tpu_custom_call.1} parent=1 // pred_check
      _
    $region55: #{tpu_custom_call.1} parent=1 // pred_check_branch
      %111 = sbr.rel (0) target = $region57
    $region56: #{tpu_custom_call.1} parent=1 // pred_region
      %112 = dma.done [#allocation6], 128
    $region57: #{tpu_custom_call.1} parent=1 // pred_fallthru
      _
    // Predicated region
    $region58: #{tpu_custom_call.1} parent=1 // pred_check
      _
    $region59: #{tpu_custom_call.1} parent=1 // pred_check_branch
      %114 = sbr.rel (0) target = $region61
    $region60: #{tpu_custom_call.1} parent=1 // pred_region
      %115 = dma.done [#allocation9], 256
    $region61: #{tpu_custom_call.1} parent=1 // pred_fallthru
      _
    // Predicated region
    $region62: #{tpu_custom_call.1} parent=1 // pred_check
      _
    $region63: #{tpu_custom_call.1} parent=1 // pred_check_branch
      %117 = sbr.rel (0) target = $region65
    $region64: #{tpu_custom_call.1} parent=1 // pred_region
      %118 = dma.done [#allocation9], 256
    $region65: #{tpu_custom_call.1} parent=1 // pred_fallthru
      _
    // Predicated region
    $region66: #{tpu_custom_call.1} parent=1 // pred_check
      _
    $region67: #{tpu_custom_call.1} parent=1 // pred_check_branch
      %120 = sbr.rel (0) target = $region69
    $region68: #{tpu_custom_call.1} parent=1 // pred_region
      %121 = dma.done [#allocation12], 16
    $region69: #{tpu_custom_call.1} parent=1 // pred_fallthru
      _
    %v123 = vld [vmem:[#allocation2] sm:$0xf]
    %v124 = vld [vmem:[#allocation2 + $0x4] sm:$0xf]
    %v125 = vld [vmem:[#allocation8] sm:$0xf]
    %v126 = vld [vmem:[#allocation8 + $0x4] sm:$0xf]
    %v127 = vld [vmem:[#allocation8 + $0x8] sm:$0xf]
    %v128 = vld [vmem:[#allocation8 + $0xc] sm:$0xf]
    %v129 = vld [vmem:[%s4] sm:$0x1]
    %v131 = vlaneseq
    %v132 = vshrl.u32 %v131, 7
    %v133 = vsub.s32 0, %v132
    %v134 = vrot.slane %v129, %v133
    %v138 = vunpack.c.l.b16 %v123
    %v139 = vunpack.c.l.b16 %v124
    %v140 = vpack.c.b16 %v139, %v138
    %v145 = vunpack.c.l.b16 %v125
    %v146 = vunpack.c.l.b16 %v126
    %v147 = vunpack.c.l.b16 %v127
    %v148 = vunpack.c.l.b16 %v128
    %v149 = vpack.c.b16 %v146, %v145
    %v150 = vpack.c.b16 %v148, %v147
    %vm153 = vcmask 261120
    %v155 = vsel %vm153, %v140, 0
    %157 = vmatprep.subr.bf16.mxu0 0
    %158 = vmatpush1.bf16.msra.mxu0 %v149
    %159 = vmatprep.subr.bf16.mxu0 0
    %160 = vmatpush1.bf16.msra.mxu0 %v150
    %161 = vmatprep.subr.bf16.mxu0 0
    %162 = vmatpush1.bf16.msra.mxu0 0
    %163 = vmatprep.subr.bf16.mxu0 0
    %164 = vmatpush1.bf16.msra.mxu0 0
    %165 = vmatprep.subr.bf16.mxu0 0
    %166 = vmatpush1.bf16.msra.mxu0 0
    %167 = vmatprep.subr.bf16.mxu0 0
    %168 = vmatpush1.bf16.msra.mxu0 0
    %169 = vmatprep.subr.bf16.mxu0 0
    %170 = vmatpush1.bf16.msra.mxu0 0
    %171 = vmatprep.subr.bf16.mxu0 0
    %172 = vmatpush1.bf16.msra.mxu0 0
    %173 = vmatprep.subr.bf16.mxu0 0
    %174 = vmatpush1.bf16.msra.mxu0 0
    %175 = vmatprep.subr.bf16.mxu0 0
    %176 = vmatpush1.bf16.msra.mxu0 0
    %177 = vmatprep.subr.bf16.mxu0 0
    %178 = vmatpush1.bf16.msra.mxu0 0
    %179 = vmatprep.subr.bf16.mxu0 0
    %180 = vmatpush1.bf16.msra.mxu0 0
    %181 = vmatprep.subr.bf16.mxu0 0
    %182 = vmatpush1.bf16.msra.mxu0 0
    %183 = vmatprep.subr.bf16.mxu0 0
    %184 = vmatpush1.bf16.msra.mxu0 0
    %185 = vmatprep.subr.bf16.mxu0 0
    %186 = vmatpush1.bf16.msra.mxu0 0
    %187 = vmatprep.subr.bf16.mxu0 0
    %188 = vmatpush1.bf16.msra.mxu0 0
    %189 = vmatprep.mubr.bf16.mxu0 0
    %190 = vmatmul.mubr.bf16.gmra.mrb[0].mxu0 %v155
    %v191 = vpop.f32.mrb[0].mxu0
    %v192 = vadd.f32 %v134, %v191
    %v193 = vpop.f32.mrb[0].mxu0
    %v194 = vpop.f32.mrb[0].mxu0
    %v195 = vadd.f32 %v134, %v194
    %v196 = vpop.f32.mrb[0].mxu0
    %197 = vdwg.mxu0
    %v198 = vmul.f32 %v192, 0.35355338
    %v199 = vmul.f32 %v195, 0.35355338
    %v200 = vld [vmem:[#allocation5] sm:$0xf]
    %v201 = vld [vmem:[#allocation5 + $0x4] sm:$0xf]
    %v202 = vld [vmem:[%s5] sm:$0xf]
    %v203 = vld [vmem:[%s5 + $0x4] sm:$0xf]
    %v204 = vld [vmem:[%s5 + $0x8] sm:$0xf]
    %v205 = vld [vmem:[%s5 + $0xc] sm:$0xf]
    %v206 = vld [vmem:[%s6] sm:$0x1]
    %v208 = vlaneseq
    %v209 = vshrl.u32 %v208, 7
    %v210 = vsub.s32 0, %v209
    %v211 = vrot.slane %v206, %v210
    %v215 = vunpack.c.l.b16 %v200
    %v216 = vunpack.c.l.b16 %v201
    %v217 = vpack.c.b16 %v216, %v215
    %v222 = vunpack.c.l.b16 %v202
    %v223 = vunpack.c.l.b16 %v203
    %v224 = vunpack.c.l.b16 %v204
    %v225 = vunpack.c.l.b16 %v205
    %v226 = vpack.c.b16 %v223, %v222
    %v227 = vpack.c.b16 %v225, %v224
    %v231 = vsel %vm153, %v217, 0
    %233 = vmatprep.subr.bf16.mxu0 0
    %234 = vmatpush1.bf16.msra.mxu0 %v226
    %235 = vmatprep.subr.bf16.mxu0 0
    %236 = vmatpush1.bf16.msra.mxu0 %v227
    %237 = vmatprep.subr.bf16.mxu0 0
    %238 = vmatpush1.bf16.msra.mxu0 0
    %239 = vmatprep.subr.bf16.mxu0 0
    %240 = vmatpush1.bf16.msra.mxu0 0
    %241 = vmatprep.subr.bf16.mxu0 0
    %242 = vmatpush1.bf16.msra.mxu0 0
    %243 = vmatprep.subr.bf16.mxu0 0
    %244 = vmatpush1.bf16.msra.mxu0 0
    %245 = vmatprep.subr.bf16.mxu0 0
    %246 = vmatpush1.bf16.msra.mxu0 0
    %247 = vmatprep.subr.bf16.mxu0 0
    %248 = vmatpush1.bf16.msra.mxu0 0
    %249 = vmatprep.subr.bf16.mxu0 0
    %250 = vmatpush1.bf16.msra.mxu0 0
    %251 = vmatprep.subr.bf16.mxu0 0
    %252 = vmatpush1.bf16.msra.mxu0 0
    %253 = vmatprep.subr.bf16.mxu0 0
    %254 = vmatpush1.bf16.msra.mxu0 0
    %255 = vmatprep.subr.bf16.mxu0 0
    %256 = vmatpush1.bf16.msra.mxu0 0
    %257 = vmatprep.subr.bf16.mxu0 0
    %258 = vmatpush1.bf16.msra.mxu0 0
    %259 = vmatprep.subr.bf16.mxu0 0
    %260 = vmatpush1.bf16.msra.mxu0 0
    %261 = vmatprep.subr.bf16.mxu0 0
    %262 = vmatpush1.bf16.msra.mxu0 0
    %263 = vmatprep.subr.bf16.mxu0 0
    %264 = vmatpush1.bf16.msra.mxu0 0
    %265 = vmatprep.mubr.bf16.mxu0 0
    %266 = vmatmul.mubr.bf16.gmra.mrb[0].mxu0 %v231
    %v267 = vpop.f32.mrb[0].mxu0
    %v268 = vadd.f32 %v211, %v267
    %v269 = vpop.f32.mrb[0].mxu0
    %v270 = vpop.f32.mrb[0].mxu0
    %v271 = vadd.f32 %v211, %v270
    %v272 = vpop.f32.mrb[0].mxu0
    %273 = vdwg.mxu0
    %v274 = vld [vmem:[#allocation7] sm:$0xf]
    %v275 = vld [vmem:[#allocation7 + $0x4] sm:$0xf]
    %v276 = vld [vmem:[#allocation10] sm:$0xf]
    %v277 = vld [vmem:[#allocation10 + $0x4] sm:$0xf]
    %v278 = vld [vmem:[#allocation10 + $0x8] sm:$0xf]
    %v279 = vld [vmem:[#allocation10 + $0xc] sm:$0xf]
    %v280 = vld [vmem:[#allocation11] sm:$0x1]
    %v282 = vlaneseq
    %v283 = vshrl.u32 %v282, 7
    %v284 = vsub.s32 0, %v283
    %v285 = vrot.slane %v280, %v284
    %v289 = vunpack.c.l.b16 %v274
    %v290 = vunpack.c.l.b16 %v275
    %v291 = vpack.c.b16 %v290, %v289
    %v296 = vunpack.c.l.b16 %v276
    %v297 = vunpack.c.l.b16 %v277
    %v298 = vunpack.c.l.b16 %v278
    %v299 = vunpack.c.l.b16 %v279
    %v300 = vpack.c.b16 %v297, %v296
    %v301 = vpack.c.b16 %v299, %v298
    %v305 = vsel %vm153, %v291, 0
    %307 = vmatprep.subr.bf16.mxu0 0
    %308 = vmatpush1.bf16.msra.mxu0 %v300
    %309 = vmatprep.subr.bf16.mxu0 0
    %310 = vmatpush1.bf16.msra.mxu0 %v301
    %311 = vmatprep.subr.bf16.mxu0 0
    %312 = vmatpush1.bf16.msra.mxu0 0
    %313 = vmatprep.subr.bf16.mxu0 0
    %314 = vmatpush1.bf16.msra.mxu0 0
    %315 = vmatprep.subr.bf16.mxu0 0
    %316 = vmatpush1.bf16.msra.mxu0 0
    %317 = vmatprep.subr.bf16.mxu0 0
    %318 = vmatpush1.bf16.msra.mxu0 0
    %319 = vmatprep.subr.bf16.mxu0 0
    %320 = vmatpush1.bf16.msra.mxu0 0
    %321 = vmatprep.subr.bf16.mxu0 0
    %322 = vmatpush1.bf16.msra.mxu0 0
    %323 = vmatprep.subr.bf16.mxu0 0
    %324 = vmatpush1.bf16.msra.mxu0 0
    %325 = vmatprep.subr.bf16.mxu0 0
    %326 = vmatpush1.bf16.msra.mxu0 0
    %327 = vmatprep.subr.bf16.mxu0 0
    %328 = vmatpush1.bf16.msra.mxu0 0
    %329 = vmatprep.subr.bf16.mxu0 0
    %330 = vmatpush1.bf16.msra.mxu0 0
    %331 = vmatprep.subr.bf16.mxu0 0
    %332 = vmatpush1.bf16.msra.mxu0 0
    %333 = vmatprep.subr.bf16.mxu0 0
    %334 = vmatpush1.bf16.msra.mxu0 0
    %335 = vmatprep.subr.bf16.mxu0 0
    %336 = vmatpush1.bf16.msra.mxu0 0
    %337 = vmatprep.subr.bf16.mxu0 0
    %338 = vmatpush1.bf16.msra.mxu0 0
    %339 = vmatprep.mubr.bf16.mxu0 0
    %340 = vmatmul.mubr.bf16.gmra.mrb[0].mxu0 %v305
    %v341 = vpop.f32.mrb[0].mxu0
    %v342 = vadd.f32 %v285, %v341
    %v343 = vpop.f32.mrb[0].mxu0
    %v344 = vpop.f32.mrb[0].mxu0
    %v345 = vadd.f32 %v285, %v344
    %v346 = vpop.f32.mrb[0].mxu0
    %347 = vdwg.mxu0
    %v348 = vpack.c.bf16 %v199, %v198
    %v349 = vpack.c.bf16 %v271, %v268
    %v350 = vpack.c.bf16 %v345, %v342
    %vm351 = vcmask 64512
    %v353 = vsel %vm351, %v348, 0
    %v356 = vsel %vm351, %v349, 0
    %358 = vmatprep.subr.bf16.mxu0 0
    %359 = vmatpush1.bf16.xpose.msra.mxu0 %v356
    %360 = vmatprep.subr.bf16.mxu0 0
    %361 = vmatpush1.bf16.xpose.msra.mxu0 0
    %362 = vmatprep.subr.bf16.mxu0 0
    %363 = vmatpush1.bf16.xpose.msra.mxu0 0
    %364 = vmatprep.subr.bf16.mxu0 0
    %365 = vmatpush1.bf16.xpose.msra.mxu0 0
    %366 = vmatprep.subr.bf16.mxu0 0
    %367 = vmatpush1.bf16.xpose.msra.mxu0 0
    %368 = vmatprep.subr.bf16.mxu0 0
    %369 = vmatpush1.bf16.xpose.msra.mxu0 0
    %370 = vmatprep.subr.bf16.mxu0 0
    %371 = vmatpush1.bf16.xpose.msra.mxu0 0
    %372 = vmatprep.subr.bf16.mxu0 0
    %373 = vmatpush1.bf16.xpose.msra.mxu0 0
    %374 = vmatprep.subr.bf16.mxu0 0
    %375 = vmatpush1.bf16.xpose.msra.mxu0 0
    %376 = vmatprep.subr.bf16.mxu0 0
    %377 = vmatpush1.bf16.xpose.msra.mxu0 0
    %378 = vmatprep.subr.bf16.mxu0 0
    %379 = vmatpush1.bf16.xpose.msra.mxu0 0
    %380 = vmatprep.subr.bf16.mxu0 0
    %381 = vmatpush1.bf16.xpose.msra.mxu0 0
    %382 = vmatprep.subr.bf16.mxu0 0
    %383 = vmatpush1.bf16.xpose.msra.mxu0 0
    %384 = vmatprep.subr.bf16.mxu0 0
    %385 = vmatpush1.bf16.xpose.msra.mxu0 0
    %386 = vmatprep.subr.bf16.mxu0 0
    %387 = vmatpush1.bf16.xpose.msra.mxu0 0
    %388 = vmatprep.subr.bf16.mxu0 0
    %389 = vmatpush1.bf16.xpose.msra.mxu0 0
    %390 = vmatprep.mubr.bf16.mxu0 0
    %391 = vmatmul.mubr.bf16.gmra.mrb[0].mxu0 %v353
    %v392 = vpop.f32.mrb[0].mxu0
    %v393 = vadd.f32 0.0, %v392
    %v394 = vpop.f32.mrb[0].mxu0
    %v395 = vpop.f32.mrb[0].mxu0
    %v396 = vpop.f32.mrb[0].mxu0
    %397 = vdwg.mxu0
    %v398 = vsel %vm351, %v393, -inf
    %399 = vmax.xlane.f32.xlu0 %v398
    %v400 = vpop.xlane.xlu0 %399
    %v401 = vsub.f32 %v393, %v400
    %v402 = vmul.f32 %v401, 1.442695
    %v403 = vpow.pop %v402
    %v404 = vsel %vm351, %v403, 0.0
    %405 = vadd.xlane.f32.xlu0 %v404
    %v406 = vpop.xlane.xlu0 %405
    %v407 = vrcp.pop %v406
    %v408 = vmul.f32 %v403, %v407
    %409 = vst.msk [vmem:[#allocation14] sm:$0xff] %vm351, %v408
    %v410 = vpack.c.bf16 %v408, %v408
    %v412 = vsel %vm351, %v410, 0
    %vm414 = vcmask 1043456
    %v416 = vsel %vm414, %v350, 0
    %418 = vmatprep.subr.bf16.mxu0 0
    %419 = vmatpush1.bf16.msra.mxu0 %v416
    %420 = vmatprep.subr.bf16.mxu0 0
    %421 = vmatpush1.bf16.msra.mxu0 0
    %422 = vmatprep.subr.bf16.mxu0 0
    %423 = vmatpush1.bf16.msra.mxu0 0
    %424 = vmatprep.subr.bf16.mxu0 0
    %425 = vmatpush1.bf16.msra.mxu0 0
    %426 = vmatprep.subr.bf16.mxu0 0
    %427 = vmatpush1.bf16.msra.mxu0 0
    %428 = vmatprep.subr.bf16.mxu0 0
    %429 = vmatpush1.bf16.msra.mxu0 0
    %430 = vmatprep.subr.bf16.mxu0 0
    %431 = vmatpush1.bf16.msra.mxu0 0
    %432 = vmatprep.subr.bf16.mxu0 0
    %433 = vmatpush1.bf16.msra.mxu0 0
    %434 = vmatprep.subr.bf16.mxu0 0
    %435 = vmatpush1.bf16.msra.mxu0 0
    %436 = vmatprep.subr.bf16.mxu0 0
    %437 = vmatpush1.bf16.msra.mxu0 0
    %438 = vmatprep.subr.bf16.mxu0 0
    %439 = vmatpush1.bf16.msra.mxu0 0
    %440 = vmatprep.subr.bf16.mxu0 0
    %441 = vmatpush1.bf16.msra.mxu0 0
    %442 = vmatprep.subr.bf16.mxu0 0
    %443 = vmatpush1.bf16.msra.mxu0 0
    %444 = vmatprep.subr.bf16.mxu0 0
    %445 = vmatpush1.bf16.msra.mxu0 0
    %446 = vmatprep.subr.bf16.mxu0 0
    %447 = vmatpush1.bf16.msra.mxu0 0
    %448 = vmatprep.subr.bf16.mxu0 0
    %449 = vmatpush1.bf16.msra.mxu0 0
    %450 = vmatprep.mubr.bf16.mxu0 0
    %451 = vmatmul.mubr.bf16.gmra.mrb[0].mxu0 %v412
    %v452 = vpop.f32.mrb[0].mxu0
    %v453 = vadd.f32 0.0, %v452
    %v454 = vpop.f32.mrb[0].mxu0
    %v455 = vpop.f32.mrb[0].mxu0
    %v456 = vpop.f32.mrb[0].mxu0
    %457 = vdwg.mxu0
    %v458 = vpack.c.bf16 %v453, %v453
    %v459 = vld [vmem:[%s9] sm:$0xf]
    %461 = vrot.lane.b32.xlu0 %v348, 120
    %v462 = vpop.permute.xlu0 %461
    %464 = vrot.lane.b32.xlu0 %v349, 120
    %v465 = vpop.permute.xlu0 %464
    %v467 = vsel %vm351, %v462, 0
    %v470 = vsel %vm351, %v465, 0
    %472 = vmatprep.subr.bf16.mxu0 0
    %473 = vmatpush1.bf16.xpose.msra.mxu0 %v470
    %474 = vmatprep.subr.bf16.mxu0 0
    %475 = vmatpush1.bf16.xpose.msra.mxu0 0
    %476 = vmatprep.subr.bf16.mxu0 0
    %477 = vmatpush1.bf16.xpose.msra.mxu0 0
    %478 = vmatprep.subr.bf16.mxu0 0
    %479 = vmatpush1.bf16.xpose.msra.mxu0 0
    %480 = vmatprep.subr.bf16.mxu0 0
    %481 = vmatpush1.bf16.xpose.msra.mxu0 0
    %482 = vmatprep.subr.bf16.mxu0 0
    %483 = vmatpush1.bf16.xpose.msra.mxu0 0
    %484 = vmatprep.subr.bf16.mxu0 0
    %485 = vmatpush1.bf16.xpose.msra.mxu0 0
    %486 = vmatprep.subr.bf16.mxu0 0
    %487 = vmatpush1.bf16.xpose.msra.mxu0 0
    %488 = vmatprep.subr.bf16.mxu0 0
    %489 = vmatpush1.bf16.xpose.msra.mxu0 0
    %490 = vmatprep.subr.bf16.mxu0 0
    %491 = vmatpush1.bf16.xpose.msra.mxu0 0
    %492 = vmatprep.subr.bf16.mxu0 0
    %493 = vmatpush1.bf16.xpose.msra.mxu0 0
    %494 = vmatprep.subr.bf16.mxu0 0
    %495 = vmatpush1.bf16.xpose.msra.mxu0 0
    %496 = vmatprep.subr.bf16.mxu0 0
    %497 = vmatpush1.bf16.xpose.msra.mxu0 0
    %498 = vmatprep.subr.bf16.mxu0 0
    %499 = vmatpush1.bf16.xpose.msra.mxu0 0
    %500 = vmatprep.subr.bf16.mxu0 0
    %501 = vmatpush1.bf16.xpose.msra.mxu0 0
    %502 = vmatprep.subr.bf16.mxu0 0
    %503 = vmatpush1.bf16.xpose.msra.mxu0 0
    %504 = vmatprep.mubr.bf16.mxu0 0
    %505 = vmatmul.mubr.bf16.gmra.mrb[0].mxu0 %v467
    %v506 = vpop.f32.mrb[0].mxu0
    %v507 = vadd.f32 0.0, %v506
    %v508 = vpop.f32.mrb[0].mxu0
    %v509 = vpop.f32.mrb[0].mxu0
    %v510 = vpop.f32.mrb[0].mxu0
    %511 = vdwg.mxu0
    %v512 = vsel %vm351, %v507, -inf
    %513 = vmax.xlane.f32.xlu0 %v512
    %v514 = vpop.xlane.xlu0 %513
    %v515 = vsub.f32 %v507, %v514
    %v516 = vmul.f32 %v515, 1.442695
    %v517 = vpow.pop %v516
    %v518 = vsel %vm351, %v517, 0.0
    %519 = vadd.xlane.f32.xlu0 %v518
    %v520 = vpop.xlane.xlu0 %519
    %v521 = vrcp.pop %v520
    %v522 = vmul.f32 %v517, %v521
    %524 = vrot.lane.b32.xlu0 %v522, 8
    %v525 = vpop.permute.xlu0 %524
    %vm527 = vcmask 130112
    %528 = vst.msk [vmem:[#allocation14] sm:$0xff] %vm527, %v525
    %v529 = vpack.c.bf16 %v522, %v522
    %531 = vrot.lane.b32.xlu0 %v350, 120
    %v532 = vpop.permute.xlu0 %531
    %v534 = vsel %vm351, %v529, 0
    %v537 = vsel %vm414, %v532, 0
    %539 = vmatprep.subr.bf16.mxu0 0
    %540 = vmatpush1.bf16.msra.mxu0 %v537
    %541 = vmatprep.subr.bf16.mxu0 0
    %542 = vmatpush1.bf16.msra.mxu0 0
    %543 = vmatprep.subr.bf16.mxu0 0
    %544 = vmatpush1.bf16.msra.mxu0 0
    %545 = vmatprep.subr.bf16.mxu0 0
    %546 = vmatpush1.bf16.msra.mxu0 0
    %547 = vmatprep.subr.bf16.mxu0 0
    %548 = vmatpush1.bf16.msra.mxu0 0
    %549 = vmatprep.subr.bf16.mxu0 0
    %550 = vmatpush1.bf16.msra.mxu0 0
    %551 = vmatprep.subr.bf16.mxu0 0
    %552 = vmatpush1.bf16.msra.mxu0 0
    %553 = vmatprep.subr.bf16.mxu0 0
    %554 = vmatpush1.bf16.msra.mxu0 0
    %555 = vmatprep.subr.bf16.mxu0 0
    %556 = vmatpush1.bf16.msra.mxu0 0
    %557 = vmatprep.subr.bf16.mxu0 0
    %558 = vmatpush1.bf16.msra.mxu0 0
    %559 = vmatprep.subr.bf16.mxu0 0
    %560 = vmatpush1.bf16.msra.mxu0 0
    %561 = vmatprep.subr.bf16.mxu0 0
    %562 = vmatpush1.bf16.msra.mxu0 0
    %563 = vmatprep.subr.bf16.mxu0 0
    %564 = vmatpush1.bf16.msra.mxu0 0
    %565 = vmatprep.subr.bf16.mxu0 0
    %566 = vmatpush1.bf16.msra.mxu0 0
    %567 = vmatprep.subr.bf16.mxu0 0
    %568 = vmatpush1.bf16.msra.mxu0 0
    %569 = vmatprep.subr.bf16.mxu0 0
    %570 = vmatpush1.bf16.msra.mxu0 0
    %571 = vmatprep.mubr.bf16.mxu0 0
    %572 = vmatmul.mubr.bf16.gmra.mrb[0].mxu0 %v534
    %v573 = vpop.f32.mrb[0].mxu0
    %v574 = vadd.f32 0.0, %v573
    %v575 = vpop.f32.mrb[0].mxu0
    %v576 = vpop.f32.mrb[0].mxu0
    %v577 = vpop.f32.mrb[0].mxu0
    %578 = vdwg.mxu0
    %v579 = vpack.c.bf16 %v574, %v574
    %v580 = vld [vmem:[%s9 + $0x4] sm:$0xf]
    %v582 = vsel %vm351, %v579, 0
    %v585 = vsel %vm414, %v580, 0
    %587 = vmatprep.subr.bf16.mxu0 0
    %588 = vmatpush1.bf16.msra.mxu0 %v585
    %589 = vmatprep.subr.bf16.mxu0 0
    %590 = vmatpush1.bf16.msra.mxu0 0
    %591 = vmatprep.subr.bf16.mxu0 0
    %592 = vmatpush1.bf16.msra.mxu0 0
    %593 = vmatprep.subr.bf16.mxu0 0
    %594 = vmatpush1.bf16.msra.mxu0 0
    %595 = vmatprep.subr.bf16.mxu0 0
    %596 = vmatpush1.bf16.msra.mxu0 0
    %597 = vmatprep.subr.bf16.mxu0 0
    %598 = vmatpush1.bf16.msra.mxu0 0
    %599 = vmatprep.subr.bf16.mxu0 0
    %600 = vmatpush1.bf16.msra.mxu0 0
    %601 = vmatprep.subr.bf16.mxu0 0
    %602 = vmatpush1.bf16.msra.mxu0 0
    %603 = vmatprep.subr.bf16.mxu0 0
    %604 = vmatpush1.bf16.msra.mxu0 0
    %605 = vmatprep.subr.bf16.mxu0 0
    %606 = vmatpush1.bf16.msra.mxu0 0
    %607 = vmatprep.subr.bf16.mxu0 0
    %608 = vmatpush1.bf16.msra.mxu0 0
    %609 = vmatprep.subr.bf16.mxu0 0
    %610 = vmatpush1.bf16.msra.mxu0 0
    %611 = vmatprep.subr.bf16.mxu0 0
    %612 = vmatpush1.bf16.msra.mxu0 0
    %613 = vmatprep.subr.bf16.mxu0 0
    %614 = vmatpush1.bf16.msra.mxu0 0
    %615 = vmatprep.subr.bf16.mxu0 0
    %616 = vmatpush1.bf16.msra.mxu0 0
    %617 = vmatprep.subr.bf16.mxu0 0
    %618 = vmatpush1.bf16.msra.mxu0 0
    %619 = vmatprep.mubr.bf16.mxu0 0
    %620 = vmatmul.mubr.bf16.gmra.mrb[0].mxu0 %v582
    %v621 = vpop.f32.mrb[0].mxu0
    %v622 = vadd.f32 0.0, %v621
    %v623 = vpop.f32.mrb[0].mxu0
    %v624 = vpop.f32.mrb[0].mxu0
    %v625 = vpop.f32.mrb[0].mxu0
    %626 = vdwg.mxu0
    %v628 = vsel %vm351, %v458, 0
    %v631 = vsel %vm414, %v459, 0
    %633 = vmatprep.subr.bf16.mxu0 0
    %634 = vmatpush1.bf16.msra.mxu0 %v631
    %635 = vmatprep.subr.bf16.mxu0 0
    %636 = vmatpush1.bf16.msra.mxu0 0
    %637 = vmatprep.subr.bf16.mxu0 0
    %638 = vmatpush1.bf16.msra.mxu0 0
    %639 = vmatprep.subr.bf16.mxu0 0
    %640 = vmatpush1.bf16.msra.mxu0 0
    %641 = vmatprep.subr.bf16.mxu0 0
    %642 = vmatpush1.bf16.msra.mxu0 0
    %643 = vmatprep.subr.bf16.mxu0 0
    %644 = vmatpush1.bf16.msra.mxu0 0
    %645 = vmatprep.subr.bf16.mxu0 0
    %646 = vmatpush1.bf16.msra.mxu0 0
    %647 = vmatprep.subr.bf16.mxu0 0
    %648 = vmatpush1.bf16.msra.mxu0 0
    %649 = vmatprep.subr.bf16.mxu0 0
    %650 = vmatpush1.bf16.msra.mxu0 0
    %651 = vmatprep.subr.bf16.mxu0 0
    %652 = vmatpush1.bf16.msra.mxu0 0
    %653 = vmatprep.subr.bf16.mxu0 0
    %654 = vmatpush1.bf16.msra.mxu0 0
    %655 = vmatprep.subr.bf16.mxu0 0
    %656 = vmatpush1.bf16.msra.mxu0 0
    %657 = vmatprep.subr.bf16.mxu0 0
    %658 = vmatpush1.bf16.msra.mxu0 0
    %659 = vmatprep.subr.bf16.mxu0 0
    %660 = vmatpush1.bf16.msra.mxu0 0
    %661 = vmatprep.subr.bf16.mxu0 0
    %662 = vmatpush1.bf16.msra.mxu0 0
    %663 = vmatprep.subr.bf16.mxu0 0
    %664 = vmatpush1.bf16.msra.mxu0 0
    %665 = vmatprep.mubr.bf16.mxu0 0
    %666 = vmatmul.mubr.bf16.gmra.mrb[0].mxu0 %v628
    %v667 = vpop.f32.mrb[0].mxu0
    %v668 = vadd.f32 %v622, %v667
    %v669 = vpop.f32.mrb[0].mxu0
    %v670 = vpop.f32.mrb[0].mxu0
    %v671 = vpop.f32.mrb[0].mxu0
    %672 = vdwg.mxu0
    %673 = vrot.lane.b32.xlu0 %v348, 112
    %v674 = vpop.permute.xlu0 %673
    %675 = vrot.lane.b32.xlu0 %v349, 112
    %v676 = vpop.permute.xlu0 %675
    %v678 = vsel %vm351, %v674, 0
    %v681 = vsel %vm351, %v676, 0
    %683 = vmatprep.subr.bf16.mxu0 0
    %684 = vmatpush1.bf16.xpose.msra.mxu0 %v681
    %685 = vmatprep.subr.bf16.mxu0 0
    %686 = vmatpush1.bf16.xpose.msra.mxu0 0
    %687 = vmatprep.subr.bf16.mxu0 0
    %688 = vmatpush1.bf16.xpose.msra.mxu0 0
    %689 = vmatprep.subr.bf16.mxu0 0
    %690 = vmatpush1.bf16.xpose.msra.mxu0 0
    %691 = vmatprep.subr.bf16.mxu0 0
    %692 = vmatpush1.bf16.xpose.msra.mxu0 0
    %693 = vmatprep.subr.bf16.mxu0 0
    %694 = vmatpush1.bf16.xpose.msra.mxu0 0
    %695 = vmatprep.subr.bf16.mxu0 0
    %696 = vmatpush1.bf16.xpose.msra.mxu0 0
    %697 = vmatprep.subr.bf16.mxu0 0
    %698 = vmatpush1.bf16.xpose.msra.mxu0 0
    %699 = vmatprep.subr.bf16.mxu0 0
    %700 = vmatpush1.bf16.xpose.msra.mxu0 0
    %701 = vmatprep.subr.bf16.mxu0 0
    %702 = vmatpush1.bf16.xpose.msra.mxu0 0
    %703 = vmatprep.subr.bf16.mxu0 0
    %704 = vmatpush1.bf16.xpose.msra.mxu0 0
    %705 = vmatprep.subr.bf16.mxu0 0
    %706 = vmatpush1.bf16.xpose.msra.mxu0 0
    %707 = vmatprep.subr.bf16.mxu0 0
    %708 = vmatpush1.bf16.xpose.msra.mxu0 0
    %709 = vmatprep.subr.bf16.mxu0 0
    %710 = vmatpush1.bf16.xpose.msra.mxu0 0
    %711 = vmatprep.subr.bf16.mxu0 0
    %712 = vmatpush1.bf16.xpose.msra.mxu0 0
    %713 = vmatprep.subr.bf16.mxu0 0
    %714 = vmatpush1.bf16.xpose.msra.mxu0 0
    %715 = vmatprep.mubr.bf16.mxu0 0
    %716 = vmatmul.mubr.bf16.gmra.mrb[0].mxu0 %v678
    %v717 = vpop.f32.mrb[0].mxu0
    %v718 = vadd.f32 0.0, %v717
    %v719 = vpop.f32.mrb[0].mxu0
    %v720 = vpop.f32.mrb[0].mxu0
    %v721 = vpop.f32.mrb[0].mxu0
    %722 = vdwg.mxu0
    %v723 = vsel %vm351, %v718, -inf
    %724 = vmax.xlane.f32.xlu0 %v723
    %v725 = vpop.xlane.xlu0 %724
    %v726 = vsub.f32 %v718, %v725
    %v727 = vmul.f32 %v726, 1.442695
    %v728 = vpow.pop %v727
    %v729 = vsel %vm351, %v728, 0.0
    %730 = vadd.xlane.f32.xlu0 %v729
    %v731 = vpop.xlane.xlu0 %730
    %v732 = vrcp.pop %v731
    %v733 = vmul.f32 %v728, %v732
    %735 = vrot.lane.b32.xlu0 %v733, 16
    %v736 = vpop.permute.xlu0 %735
    %vm738 = vcmask 195712
    %739 = vst.msk [vmem:[#allocation14] sm:$0xff] %vm738, %v736
    %v740 = vpack.c.bf16 %v733, %v733
    %741 = vrot.lane.b32.xlu0 %v350, 112
    %v742 = vpop.permute.xlu0 %741
    %v744 = vsel %vm351, %v740, 0
    %v747 = vsel %vm414, %v742, 0
    %749 = vmatprep.subr.bf16.mxu0 0
    %750 = vmatpush1.bf16.msra.mxu0 %v747
    %751 = vmatprep.subr.bf16.mxu0 0
    %752 = vmatpush1.bf16.msra.mxu0 0
    %753 = vmatprep.subr.bf16.mxu0 0
    %754 = vmatpush1.bf16.msra.mxu0 0
    %755 = vmatprep.subr.bf16.mxu0 0
    %756 = vmatpush1.bf16.msra.mxu0 0
    %757 = vmatprep.subr.bf16.mxu0 0
    %758 = vmatpush1.bf16.msra.mxu0 0
    %759 = vmatprep.subr.bf16.mxu0 0
    %760 = vmatpush1.bf16.msra.mxu0 0
    %761 = vmatprep.subr.bf16.mxu0 0
    %762 = vmatpush1.bf16.msra.mxu0 0
    %763 = vmatprep.subr.bf16.mxu0 0
    %764 = vmatpush1.bf16.msra.mxu0 0
    %765 = vmatprep.subr.bf16.mxu0 0
    %766 = vmatpush1.bf16.msra.mxu0 0
    %767 = vmatprep.subr.bf16.mxu0 0
    %768 = vmatpush1.bf16.msra.mxu0 0
    %769 = vmatprep.subr.bf16.mxu0 0
    %770 = vmatpush1.bf16.msra.mxu0 0
    %771 = vmatprep.subr.bf16.mxu0 0
    %772 = vmatpush1.bf16.msra.mxu0 0
    %773 = vmatprep.subr.bf16.mxu0 0
    %774 = vmatpush1.bf16.msra.mxu0 0
    %775 = vmatprep.subr.bf16.mxu0 0
    %776 = vmatpush1.bf16.msra.mxu0 0
    %777 = vmatprep.subr.bf16.mxu0 0
    %778 = vmatpush1.bf16.msra.mxu0 0
    %779 = vmatprep.subr.bf16.mxu0 0
    %780 = vmatpush1.bf16.msra.mxu0 0
    %781 = vmatprep.mubr.bf16.mxu0 0
    %782 = vmatmul.mubr.bf16.gmra.mrb[0].mxu0 %v744
    %v783 = vpop.f32.mrb[0].mxu0
    %v784 = vadd.f32 0.0, %v783
    %v785 = vpop.f32.mrb[0].mxu0
    %v786 = vpop.f32.mrb[0].mxu0
    %v787 = vpop.f32.mrb[0].mxu0
    %788 = vdwg.mxu0
    %v789 = vpack.c.bf16 %v784, %v784
    %v790 = vld [vmem:[%s9 + $0x8] sm:$0xf]
    %v792 = vsel %vm351, %v789, 0
    %v795 = vsel %vm414, %v790, 0
    %797 = vmatprep.subr.bf16.mxu0 0
    %798 = vmatpush1.bf16.msra.mxu0 %v795
    %799 = vmatprep.subr.bf16.mxu0 0
    %800 = vmatpush1.bf16.msra.mxu0 0
    %801 = vmatprep.subr.bf16.mxu0 0
    %802 = vmatpush1.bf16.msra.mxu0 0
    %803 = vmatprep.subr.bf16.mxu0 0
    %804 = vmatpush1.bf16.msra.mxu0 0
    %805 = vmatprep.subr.bf16.mxu0 0
    %806 = vmatpush1.bf16.msra.mxu0 0
    %807 = vmatprep.subr.bf16.mxu0 0
    %808 = vmatpush1.bf16.msra.mxu0 0
    %809 = vmatprep.subr.bf16.mxu0 0
    %810 = vmatpush1.bf16.msra.mxu0 0
    %811 = vmatprep.subr.bf16.mxu0 0
    %812 = vmatpush1.bf16.msra.mxu0 0
    %813 = vmatprep.subr.bf16.mxu0 0
    %814 = vmatpush1.bf16.msra.mxu0 0
    %815 = vmatprep.subr.bf16.mxu0 0
    %816 = vmatpush1.bf16.msra.mxu0 0
    %817 = vmatprep.subr.bf16.mxu0 0
    %818 = vmatpush1.bf16.msra.mxu0 0
    %819 = vmatprep.subr.bf16.mxu0 0
    %820 = vmatpush1.bf16.msra.mxu0 0
    %821 = vmatprep.subr.bf16.mxu0 0
    %822 = vmatpush1.bf16.msra.mxu0 0
    %823 = vmatprep.subr.bf16.mxu0 0
    %824 = vmatpush1.bf16.msra.mxu0 0
    %825 = vmatprep.subr.bf16.mxu0 0
    %826 = vmatpush1.bf16.msra.mxu0 0
    %827 = vmatprep.subr.bf16.mxu0 0
    %828 = vmatpush1.bf16.msra.mxu0 0
    %829 = vmatprep.mubr.bf16.mxu0 0
    %830 = vmatmul.mubr.bf16.gmra.mrb[0].mxu0 %v792
    %v831 = vpop.f32.mrb[0].mxu0
    %v832 = vadd.f32 0.0, %v831
    %v833 = vpop.f32.mrb[0].mxu0
    %v834 = vpop.f32.mrb[0].mxu0
    %v835 = vpop.f32.mrb[0].mxu0
    %836 = vdwg.mxu0
    %v837 = vadd.f32 %v668, %v832
    %838 = vrot.lane.b32.xlu0 %v348, 104
    %v839 = vpop.permute.xlu0 %838
    %840 = vrot.lane.b32.xlu0 %v349, 104
    %v841 = vpop.permute.xlu0 %840
    %v843 = vsel %vm351, %v839, 0
    %v846 = vsel %vm351, %v841, 0
    %848 = vmatprep.subr.bf16.mxu0 0
    %849 = vmatpush1.bf16.xpose.msra.mxu0 %v846
    %850 = vmatprep.subr.bf16.mxu0 0
    %851 = vmatpush1.bf16.xpose.msra.mxu0 0
    %852 = vmatprep.subr.bf16.mxu0 0
    %853 = vmatpush1.bf16.xpose.msra.mxu0 0
    %854 = vmatprep.subr.bf16.mxu0 0
    %855 = vmatpush1.bf16.xpose.msra.mxu0 0
    %856 = vmatprep.subr.bf16.mxu0 0
    %857 = vmatpush1.bf16.xpose.msra.mxu0 0
    %858 = vmatprep.subr.bf16.mxu0 0
    %859 = vmatpush1.bf16.xpose.msra.mxu0 0
    %860 = vmatprep.subr.bf16.mxu0 0
    %861 = vmatpush1.bf16.xpose.msra.mxu0 0
    %862 = vmatprep.subr.bf16.mxu0 0
    %863 = vmatpush1.bf16.xpose.msra.mxu0 0
    %864 = vmatprep.subr.bf16.mxu0 0
    %865 = vmatpush1.bf16.xpose.msra.mxu0 0
    %866 = vmatprep.subr.bf16.mxu0 0
    %867 = vmatpush1.bf16.xpose.msra.mxu0 0
    %868 = vmatprep.subr.bf16.mxu0 0
    %869 = vmatpush1.bf16.xpose.msra.mxu0 0
    %870 = vmatprep.subr.bf16.mxu0 0
    %871 = vmatpush1.bf16.xpose.msra.mxu0 0
    %872 = vmatprep.subr.bf16.mxu0 0
    %873 = vmatpush1.bf16.xpose.msra.mxu0 0
    %874 = vmatprep.subr.bf16.mxu0 0
    %875 = vmatpush1.bf16.xpose.msra.mxu0 0
    %876 = vmatprep.subr.bf16.mxu0 0
    %877 = vmatpush1.bf16.xpose.msra.mxu0 0
    %878 = vmatprep.subr.bf16.mxu0 0
    %879 = vmatpush1.bf16.xpose.msra.mxu0 0
    %880 = vmatprep.mubr.bf16.mxu0 0
    %881 = vmatmul.mubr.bf16.gmra.mrb[0].mxu0 %v843
    %v882 = vpop.f32.mrb[0].mxu0
    %v883 = vadd.f32 0.0, %v882
    %v884 = vpop.f32.mrb[0].mxu0
    %v885 = vpop.f32.mrb[0].mxu0
    %v886 = vpop.f32.mrb[0].mxu0
    %887 = vdwg.mxu0
    %v888 = vsel %vm351, %v883, -inf
    %889 = vmax.xlane.f32.xlu0 %v888
    %v890 = vpop.xlane.xlu0 %889
    %v891 = vsub.f32 %v883, %v890
    %v892 = vmul.f32 %v891, 1.442695
    %v893 = vpow.pop %v892
    %v894 = vsel %vm351, %v893, 0.0
    %895 = vadd.xlane.f32.xlu0 %v894
    %v896 = vpop.xlane.xlu0 %895
    %v897 = vrcp.pop %v896
    %v898 = vmul.f32 %v893, %v897
    %900 = vrot.lane.b32.xlu0 %v898, 24
    %v901 = vpop.permute.xlu0 %900
    %vm903 = vcmask 261312
    %904 = vst.msk [vmem:[#allocation14] sm:$0xff] %vm903, %v901
    %v905 = vpack.c.bf16 %v898, %v898
    %906 = vrot.lane.b32.xlu0 %v350, 104
    %v907 = vpop.permute.xlu0 %906
    %v909 = vsel %vm351, %v905, 0
    %v912 = vsel %vm414, %v907, 0
    %914 = vmatprep.subr.bf16.mxu0 0
    %915 = vmatpush1.bf16.msra.mxu0 %v912
    %916 = vmatprep.subr.bf16.mxu0 0
    %917 = vmatpush1.bf16.msra.mxu0 0
    %918 = vmatprep.subr.bf16.mxu0 0
    %919 = vmatpush1.bf16.msra.mxu0 0
    %920 = vmatprep.subr.bf16.mxu0 0
    %921 = vmatpush1.bf16.msra.mxu0 0
    %922 = vmatprep.subr.bf16.mxu0 0
    %923 = vmatpush1.bf16.msra.mxu0 0
    %924 = vmatprep.subr.bf16.mxu0 0
    %925 = vmatpush1.bf16.msra.mxu0 0
    %926 = vmatprep.subr.bf16.mxu0 0
    %927 = vmatpush1.bf16.msra.mxu0 0
    %928 = vmatprep.subr.bf16.mxu0 0
    %929 = vmatpush1.bf16.msra.mxu0 0
    %930 = vmatprep.subr.bf16.mxu0 0
    %931 = vmatpush1.bf16.msra.mxu0 0
    %932 = vmatprep.subr.bf16.mxu0 0
    %933 = vmatpush1.bf16.msra.mxu0 0
    %934 = vmatprep.subr.bf16.mxu0 0
    %935 = vmatpush1.bf16.msra.mxu0 0
    %936 = vmatprep.subr.bf16.mxu0 0
    %937 = vmatpush1.bf16.msra.mxu0 0
    %938 = vmatprep.subr.bf16.mxu0 0
    %939 = vmatpush1.bf16.msra.mxu0 0
    %940 = vmatprep.subr.bf16.mxu0 0
    %941 = vmatpush1.bf16.msra.mxu0 0
    %942 = vmatprep.subr.bf16.mxu0 0
    %943 = vmatpush1.bf16.msra.mxu0 0
    %944 = vmatprep.subr.bf16.mxu0 0
    %945 = vmatpush1.bf16.msra.mxu0 0
    %946 = vmatprep.mubr.bf16.mxu0 0
    %947 = vmatmul.mubr.bf16.gmra.mrb[0].mxu0 %v909
    %v948 = vpop.f32.mrb[0].mxu0
    %v949 = vadd.f32 0.0, %v948
    %v950 = vpop.f32.mrb[0].mxu0
    %v951 = vpop.f32.mrb[0].mxu0
    %v952 = vpop.f32.mrb[0].mxu0
    %953 = vdwg.mxu0
    %v954 = vpack.c.bf16 %v949, %v949
    %v955 = vld [vmem:[%s9 + $0xc] sm:$0xf]
    %v957 = vsel %vm351, %v954, 0
    %v960 = vsel %vm414, %v955, 0
    %962 = vmatprep.subr.bf16.mxu0 0
    %963 = vmatpush1.bf16.msra.mxu0 %v960
    %964 = vmatprep.subr.bf16.mxu0 0
    %965 = vmatpush1.bf16.msra.mxu0 0
    %966 = vmatprep.subr.bf16.mxu0 0
    %967 = vmatpush1.bf16.msra.mxu0 0
    %968 = vmatprep.subr.bf16.mxu0 0
    %969 = vmatpush1.bf16.msra.mxu0 0
    %970 = vmatprep.subr.bf16.mxu0 0
    %971 = vmatpush1.bf16.msra.mxu0 0
    %972 = vmatprep.subr.bf16.mxu0 0
    %973 = vmatpush1.bf16.msra.mxu0 0
    %974 = vmatprep.subr.bf16.mxu0 0
    %975 = vmatpush1.bf16.msra.mxu0 0
    %976 = vmatprep.subr.bf16.mxu0 0
    %977 = vmatpush1.bf16.msra.mxu0 0
    %978 = vmatprep.subr.bf16.mxu0 0
    %979 = vmatpush1.bf16.msra.mxu0 0
    %980 = vmatprep.subr.bf16.mxu0 0
    %981 = vmatpush1.bf16.msra.mxu0 0
    %982 = vmatprep.subr.bf16.mxu0 0
    %983 = vmatpush1.bf16.msra.mxu0 0
    %984 = vmatprep.subr.bf16.mxu0 0
    %985 = vmatpush1.bf16.msra.mxu0 0
    %986 = vmatprep.subr.bf16.mxu0 0
    %987 = vmatpush1.bf16.msra.mxu0 0
    %988 = vmatprep.subr.bf16.mxu0 0
    %989 = vmatpush1.bf16.msra.mxu0 0
    %990 = vmatprep.subr.bf16.mxu0 0
    %991 = vmatpush1.bf16.msra.mxu0 0
    %992 = vmatprep.subr.bf16.mxu0 0
    %993 = vmatpush1.bf16.msra.mxu0 0
    %994 = vmatprep.mubr.bf16.mxu0 0
    %995 = vmatmul.mubr.bf16.gmra.mrb[0].mxu0 %v957
    %v996 = vpop.f32.mrb[0].mxu0
    %v997 = vadd.f32 0.0, %v996
    %v998 = vpop.f32.mrb[0].mxu0
    %v999 = vpop.f32.mrb[0].mxu0
    %v1000 = vpop.f32.mrb[0].mxu0
    %1001 = vdwg.mxu0
    %v1002 = vadd.f32 %v837, %v997
    %v1003 = vld [vmem:[%s10] sm:$0x1]
    %v1005 = vlaneseq
    %v1006 = vshrl.u32 %v1005, 7
    %v1007 = vsub.s32 0, %v1006
    %v1008 = vrot.slane %v1003, %v1007
    %v1010 = vadd.f32 %v1002, %v1008
    %1011 = vst.msk [vmem:[#allocation13] sm:$0xff] %vm153, %v1010
    %v1012 = vrot.slane %v348, 4
    %v1013 = vrot.slane %v349, 4
    %v1015 = vsel %vm351, %v1012, 0
    %v1018 = vsel %vm351, %v1013, 0
    %1020 = vmatprep.subr.bf16.mxu0 0
    %1021 = vmatpush1.bf16.xpose.msra.mxu0 %v1018
    %1022 = vmatprep.subr.bf16.mxu0 0
    %1023 = vmatpush1.bf16.xpose.msra.mxu0 0
    %1024 = vmatprep.subr.bf16.mxu0 0
    %1025 = vmatpush1.bf16.xpose.msra.mxu0 0
    %1026 = vmatprep.subr.bf16.mxu0 0
    %1027 = vmatpush1.bf16.xpose.msra.mxu0 0
    %1028 = vmatprep.subr.bf16.mxu0 0
    %1029 = vmatpush1.bf16.xpose.msra.mxu0 0
    %1030 = vmatprep.subr.bf16.mxu0 0
    %1031 = vmatpush1.bf16.xpose.msra.mxu0 0
    %1032 = vmatprep.subr.bf16.mxu0 0
    %1033 = vmatpush1.bf16.xpose.msra.mxu0 0
    %1034 = vmatprep.subr.bf16.mxu0 0
    %1035 = vmatpush1.bf16.xpose.msra.mxu0 0
    %1036 = vmatprep.subr.bf16.mxu0 0
    %1037 = vmatpush1.bf16.xpose.msra.mxu0 0
    %1038 = vmatprep.subr.bf16.mxu0 0
    %1039 = vmatpush1.bf16.xpose.msra.mxu0 0
    %1040 = vmatprep.subr.bf16.mxu0 0
    %1041 = vmatpush1.bf16.xpose.msra.mxu0 0
    %1042 = vmatprep.subr.bf16.mxu0 0
    %1043 = vmatpush1.bf16.xpose.msra.mxu0 0
    %1044 = vmatprep.subr.bf16.mxu0 0
    %1045 = vmatpush1.bf16.xpose.msra.mxu0 0
    %1046 = vmatprep.subr.bf16.mxu0 0
    %1047 = vmatpush1.bf16.xpose.msra.mxu0 0
    %1048 = vmatprep.subr.bf16.mxu0 0
    %1049 = vmatpush1.bf16.xpose.msra.mxu0 0
    %1050 = vmatprep.subr.bf16.mxu0 0
    %1051 = vmatpush1.bf16.xpose.msra.mxu0 0
    %1052 = vmatprep.mubr.bf16.mxu0 0
    %1053 = vmatmul.mubr.bf16.gmra.mrb[0].mxu0 %v1015
    %v1054 = vpop.f32.mrb[0].mxu0
    %v1055 = vadd.f32 0.0, %v1054
    %v1056 = vpop.f32.mrb[0].mxu0
    %v1057 = vpop.f32.mrb[0].mxu0
    %v1058 = vpop.f32.mrb[0].mxu0
    %1059 = vdwg.mxu0
    %v1060 = vsel %vm351, %v1055, -inf
    %1061 = vmax.xlane.f32.xlu0 %v1060
    %v1062 = vpop.xlane.xlu0 %1061
    %v1063 = vsub.f32 %v1055, %v1062
    %v1064 = vmul.f32 %v1063, 1.442695
    %v1065 = vpow.pop %v1064
    %v1066 = vsel %vm351, %v1065, 0.0
    %1067 = vadd.xlane.f32.xlu0 %v1066
    %v1068 = vpop.xlane.xlu0 %1067
    %v1069 = vrcp.pop %v1068
    %v1070 = vmul.f32 %v1065, %v1069
    %1072 = vrot.lane.b32.xlu0 %v1070, 32
    %v1073 = vpop.permute.xlu0 %1072
    %vm1075 = vcmask 326912
    %1076 = vst.msk [vmem:[#allocation14] sm:$0xff] %vm1075, %v1073
    %v1077 = vpack.c.bf16 %v1070, %v1070
    %v1078 = vrot.slane %v350, 4
    %v1080 = vsel %vm351, %v1077, 0
    %v1083 = vsel %vm414, %v1078, 0
    %1085 = vmatprep.subr.bf16.mxu0 0
    %1086 = vmatpush1.bf16.msra.mxu0 %v1083
    %1087 = vmatprep.subr.bf16.mxu0 0
    %1088 = vmatpush1.bf16.msra.mxu0 0
    %1089 = vmatprep.subr.bf16.mxu0 0
    %1090 = vmatpush1.bf16.msra.mxu0 0
    %1091 = vmatprep.subr.bf16.mxu0 0
    %1092 = vmatpush1.bf16.msra.mxu0 0
    %1093 = vmatprep.subr.bf16.mxu0 0
    %1094 = vmatpush1.bf16.msra.mxu0 0
    %1095 = vmatprep.subr.bf16.mxu0 0
    %1096 = vmatpush1.bf16.msra.mxu0 0
    %1097 = vmatprep.subr.bf16.mxu0 0
    %1098 = vmatpush1.bf16.msra.mxu0 0
    %1099 = vmatprep.subr.bf16.mxu0 0
    %1100 = vmatpush1.bf16.msra.mxu0 0
    %1101 = vmatprep.subr.bf16.mxu0 0
    %1102 = vmatpush1.bf16.msra.mxu0 0
    %1103 = vmatprep.subr.bf16.mxu0 0
    %1104 = vmatpush1.bf16.msra.mxu0 0
    %1105 = vmatprep.subr.bf16.mxu0 0
    %1106 = vmatpush1.bf16.msra.mxu0 0
    %1107 = vmatprep.subr.bf16.mxu0 0
    %1108 = vmatpush1.bf16.msra.mxu0 0
    %1109 = vmatprep.subr.bf16.mxu0 0
    %1110 = vmatpush1.bf16.msra.mxu0 0
    %1111 = vmatprep.subr.bf16.mxu0 0
    %1112 = vmatpush1.bf16.msra.mxu0 0
    %1113 = vmatprep.subr.bf16.mxu0 0
    %1114 = vmatpush1.bf16.msra.mxu0 0
    %1115 = vmatprep.subr.bf16.mxu0 0
    %1116 = vmatpush1.bf16.msra.mxu0 0
    %1117 = vmatprep.mubr.bf16.mxu0 0
    %1118 = vmatmul.mubr.bf16.gmra.mrb[0].mxu0 %v1080
    %v1119 = vpop.f32.mrb[0].mxu0
    %v1120 = vadd.f32 0.0, %v1119
    %v1121 = vpop.f32.mrb[0].mxu0
    %v1122 = vpop.f32.mrb[0].mxu0
    %v1123 = vpop.f32.mrb[0].mxu0
    %1124 = vdwg.mxu0
    %v1125 = vpack.c.bf16 %v1120, %v1120
    %v1126 = vld [vmem:[%s9] sm:$0xf]
    %1127 = vrot.lane.b32.xlu0 %v1012, 120
    %v1128 = vpop.permute.xlu0 %1127
    %1129 = vrot.lane.b32.xlu0 %v1013, 120
    %v1130 = vpop.permute.xlu0 %1129
    %v1132 = vsel %vm351, %v1128, 0
    %v1135 = vsel %vm351, %v1130, 0
    %1137 = vmatprep.subr.bf16.mxu0 0
    %1138 = vmatpush1.bf16.xpose.msra.mxu0 %v1135
    %1139 = vmatprep.subr.bf16.mxu0 0
    %1140 = vmatpush1.bf16.xpose.msra.mxu0 0
    %1141 = vmatprep.subr.bf16.mxu0 0
    %1142 = vmatpush1.bf16.xpose.msra.mxu0 0
    %1143 = vmatprep.subr.bf16.mxu0 0
    %1144 = vmatpush1.bf16.xpose.msra.mxu0 0
    %1145 = vmatprep.subr.bf16.mxu0 0
    %1146 = vmatpush1.bf16.xpose.msra.mxu0 0
    %1147 = vmatprep.subr.bf16.mxu0 0
    %1148 = vmatpush1.bf16.xpose.msra.mxu0 0
    %1149 = vmatprep.subr.bf16.mxu0 0
    %1150 = vmatpush1.bf16.xpose.msra.mxu0 0
    %1151 = vmatprep.subr.bf16.mxu0 0
    %1152 = vmatpush1.bf16.xpose.msra.mxu0 0
    %1153 = vmatprep.subr.bf16.mxu0 0
    %1154 = vmatpush1.bf16.xpose.msra.mxu0 0
    %1155 = vmatprep.subr.bf16.mxu0 0
    %1156 = vmatpush1.bf16.xpose.msra.mxu0 0
    %1157 = vmatprep.subr.bf16.mxu0 0
    %1158 = vmatpush1.bf16.xpose.msra.mxu0 0
    %1159 = vmatprep.subr.bf16.mxu0 0
    %1160 = vmatpush1.bf16.xpose.msra.mxu0 0
    %1161 = vmatprep.subr.bf16.mxu0 0
    %1162 = vmatpush1.bf16.xpose.msra.mxu0 0
    %1163 = vmatprep.subr.bf16.mxu0 0
    %1164 = vmatpush1.bf16.xpose.msra.mxu0 0
    %1165 = vmatprep.subr.bf16.mxu0 0
    %1166 = vmatpush1.bf16.xpose.msra.mxu0 0
    %1167 = vmatprep.subr.bf16.mxu0 0
    %1168 = vmatpush1.bf16.xpose.msra.mxu0 0
    %1169 = vmatprep.mubr.bf16.mxu0 0
    %1170 = vmatmul.mubr.bf16.gmra.mrb[0].mxu0 %v1132
    %v1171 = vpop.f32.mrb[0].mxu0
    %v1172 = vadd.f32 0.0, %v1171
    %v1173 = vpop.f32.mrb[0].mxu0
    %v1174 = vpop.f32.mrb[0].mxu0
    %v1175 = vpop.f32.mrb[0].mxu0
    %1176 = vdwg.mxu0
    %v1177 = vsel %vm351, %v1172, -inf
    %1178 = vmax.xlane.f32.xlu0 %v1177
    %v1179 = vpop.xlane.xlu0 %1178
    %v1180 = vsub.f32 %v1172, %v1179
    %v1181 = vmul.f32 %v1180, 1.442695
    %v1182 = vpow.pop %v1181
    %v1183 = vsel %vm351, %v1182, 0.0
    %1184 = vadd.xlane.f32.xlu0 %v1183
    %v1185 = vpop.xlane.xlu0 %1184
    %v1186 = vrcp.pop %v1185
    %v1187 = vmul.f32 %v1182, %v1186
    %1189 = vrot.lane.b32.xlu0 %v1187, 40
    %v1190 = vpop.permute.xlu0 %1189
    %vm1192 = vcmask 392512
    %1193 = vst.msk [vmem:[#allocation14] sm:$0xff] %vm1192, %v1190
    %v1194 = vpack.c.bf16 %v1187, %v1187
    %1195 = vrot.lane.b32.xlu0 %v1078, 120
    %v1196 = vpop.permute.xlu0 %1195
    %v1198 = vsel %vm351, %v1194, 0
    %v1201 = vsel %vm414, %v1196, 0
    %1203 = vmatprep.subr.bf16.mxu0 0
    %1204 = vmatpush1.bf16.msra.mxu0 %v1201
    %1205 = vmatprep.subr.bf16.mxu0 0
    %1206 = vmatpush1.bf16.msra.mxu0 0
    %1207 = vmatprep.subr.bf16.mxu0 0
    %1208 = vmatpush1.bf16.msra.mxu0 0
    %1209 = vmatprep.subr.bf16.mxu0 0
    %1210 = vmatpush1.bf16.msra.mxu0 0
    %1211 = vmatprep.subr.bf16.mxu0 0
    %1212 = vmatpush1.bf16.msra.mxu0 0
    %1213 = vmatprep.subr.bf16.mxu0 0
    %1214 = vmatpush1.bf16.msra.mxu0 0
    %1215 = vmatprep.subr.bf16.mxu0 0
    %1216 = vmatpush1.bf16.msra.mxu0 0
    %1217 = vmatprep.subr.bf16.mxu0 0
    %1218 = vmatpush1.bf16.msra.mxu0 0
    %1219 = vmatprep.subr.bf16.mxu0 0
    %1220 = vmatpush1.bf16.msra.mxu0 0
    %1221 = vmatprep.subr.bf16.mxu0 0
    %1222 = vmatpush1.bf16.msra.mxu0 0
    %1223 = vmatprep.subr.bf16.mxu0 0
    %1224 = vmatpush1.bf16.msra.mxu0 0
    %1225 = vmatprep.subr.bf16.mxu0 0
    %1226 = vmatpush1.bf16.msra.mxu0 0
    %1227 = vmatprep.subr.bf16.mxu0 0
    %1228 = vmatpush1.bf16.msra.mxu0 0
    %1229 = vmatprep.subr.bf16.mxu0 0
    %1230 = vmatpush1.bf16.msra.mxu0 0
    %1231 = vmatprep.subr.bf16.mxu0 0
    %1232 = vmatpush1.bf16.msra.mxu0 0
    %1233 = vmatprep.subr.bf16.mxu0 0
    %1234 = vmatpush1.bf16.msra.mxu0 0
    %1235 = vmatprep.mubr.bf16.mxu0 0
    %1236 = vmatmul.mubr.bf16.gmra.mrb[0].mxu0 %v1198
    %v1237 = vpop.f32.mrb[0].mxu0
    %v1238 = vadd.f32 0.0, %v1237
    %v1239 = vpop.f32.mrb[0].mxu0
    %v1240 = vpop.f32.mrb[0].mxu0
    %v1241 = vpop.f32.mrb[0].mxu0
    %1242 = vdwg.mxu0
    %v1243 = vpack.c.bf16 %v1238, %v1238
    %v1244 = vld [vmem:[%s9 + $0x4] sm:$0xf]
    %v1246 = vsel %vm351, %v1243, 0
    %v1249 = vsel %vm414, %v1244, 0
    %1251 = vmatprep.subr.bf16.mxu0 0
    %1252 = vmatpush1.bf16.msra.mxu0 %v1249
    %1253 = vmatprep.subr.bf16.mxu0 0
    %1254 = vmatpush1.bf16.msra.mxu0 0
    %1255 = vmatprep.subr.bf16.mxu0 0
    %1256 = vmatpush1.bf16.msra.mxu0 0
    %1257 = vmatprep.subr.bf16.mxu0 0
    %1258 = vmatpush1.bf16.msra.mxu0 0
    %1259 = vmatprep.subr.bf16.mxu0 0
    %1260 = vmatpush1.bf16.msra.mxu0 0
    %1261 = vmatprep.subr.bf16.mxu0 0
    %1262 = vmatpush1.bf16.msra.mxu0 0
    %1263 = vmatprep.subr.bf16.mxu0 0
    %1264 = vmatpush1.bf16.msra.mxu0 0
    %1265 = vmatprep.subr.bf16.mxu0 0
    %1266 = vmatpush1.bf16.msra.mxu0 0
    %1267 = vmatprep.subr.bf16.mxu0 0
    %1268 = vmatpush1.bf16.msra.mxu0 0
    %1269 = vmatprep.subr.bf16.mxu0 0
    %1270 = vmatpush1.bf16.msra.mxu0 0
    %1271 = vmatprep.subr.bf16.mxu0 0
    %1272 = vmatpush1.bf16.msra.mxu0 0
    %1273 = vmatprep.subr.bf16.mxu0 0
    %1274 = vmatpush1.bf16.msra.mxu0 0
    %1275 = vmatprep.subr.bf16.mxu0 0
    %1276 = vmatpush1.bf16.msra.mxu0 0
    %1277 = vmatprep.subr.bf16.mxu0 0
    %1278 = vmatpush1.bf16.msra.mxu0 0
    %1279 = vmatprep.subr.bf16.mxu0 0
    %1280 = vmatpush1.bf16.msra.mxu0 0
    %1281 = vmatprep.subr.bf16.mxu0 0
    %1282 = vmatpush1.bf16.msra.mxu0 0
    %1283 = vmatprep.mubr.bf16.mxu0 0
    %1284 = vmatmul.mubr.bf16.gmra.mrb[0].mxu0 %v1246
    %v1285 = vpop.f32.mrb[0].mxu0
    %v1286 = vadd.f32 0.0, %v1285
    %v1287 = vpop.f32.mrb[0].mxu0
    %v1288 = vpop.f32.mrb[0].mxu0
    %v1289 = vpop.f32.mrb[0].mxu0
    %1290 = vdwg.mxu0
    %v1292 = vsel %vm351, %v1125, 0
    %v1295 = vsel %vm414, %v1126, 0
    %1297 = vmatprep.subr.bf16.mxu0 0
    %1298 = vmatpush1.bf16.msra.mxu0 %v1295
    %1299 = vmatprep.subr.bf16.mxu0 0
    %1300 = vmatpush1.bf16.msra.mxu0 0
    %1301 = vmatprep.subr.bf16.mxu0 0
    %1302 = vmatpush1.bf16.msra.mxu0 0
    %1303 = vmatprep.subr.bf16.mxu0 0
    %1304 = vmatpush1.bf16.msra.mxu0 0
    %1305 = vmatprep.subr.bf16.mxu0 0
    %1306 = vmatpush1.bf16.msra.mxu0 0
    %1307 = vmatprep.subr.bf16.mxu0 0
    %1308 = vmatpush1.bf16.msra.mxu0 0
    %1309 = vmatprep.subr.bf16.mxu0 0
    %1310 = vmatpush1.bf16.msra.mxu0 0
    %1311 = vmatprep.subr.bf16.mxu0 0
    %1312 = vmatpush1.bf16.msra.mxu0 0
    %1313 = vmatprep.subr.bf16.mxu0 0
    %1314 = vmatpush1.bf16.msra.mxu0 0
    %1315 = vmatprep.subr.bf16.mxu0 0
    %1316 = vmatpush1.bf16.msra.mxu0 0
    %1317 = vmatprep.subr.bf16.mxu0 0
    %1318 = vmatpush1.bf16.msra.mxu0 0
    %1319 = vmatprep.subr.bf16.mxu0 0
    %1320 = vmatpush1.bf16.msra.mxu0 0
    %1321 = vmatprep.subr.bf16.mxu0 0
    %1322 = vmatpush1.bf16.msra.mxu0 0
    %1323 = vmatprep.subr.bf16.mxu0 0
    %1324 = vmatpush1.bf16.msra.mxu0 0
    %1325 = vmatprep.subr.bf16.mxu0 0
    %1326 = vmatpush1.bf16.msra.mxu0 0
    %1327 = vmatprep.subr.bf16.mxu0 0
    %1328 = vmatpush1.bf16.msra.mxu0 0
    %1329 = vmatprep.mubr.bf16.mxu0 0
    %1330 = vmatmul.mubr.bf16.gmra.mrb[0].mxu0 %v1292
    %v1331 = vpop.f32.mrb[0].mxu0
    %v1332 = vadd.f32 %v1286, %v1331
    %v1333 = vpop.f32.mrb[0].mxu0
    %v1334 = vpop.f32.mrb[0].mxu0
    %v1335 = vpop.f32.mrb[0].mxu0
    %1336 = vdwg.mxu0
    %1337 = vrot.lane.b32.xlu0 %v1012, 112
    %v1338 = vpop.permute.xlu0 %1337
    %1339 = vrot.lane.b32.xlu0 %v1013, 112
    %v1340 = vpop.permute.xlu0 %1339
    %v1342 = vsel %vm351, %v1338, 0
    %v1345 = vsel %vm351, %v1340, 0
    %1347 = vmatprep.subr.bf16.mxu0 0
    %1348 = vmatpush1.bf16.xpose.msra.mxu0 %v1345
    %1349 = vmatprep.subr.bf16.mxu0 0
    %1350 = vmatpush1.bf16.xpose.msra.mxu0 0
    %1351 = vmatprep.subr.bf16.mxu0 0
    %1352 = vmatpush1.bf16.xpose.msra.mxu0 0
    %1353 = vmatprep.subr.bf16.mxu0 0
    %1354 = vmatpush1.bf16.xpose.msra.mxu0 0
    %1355 = vmatprep.subr.bf16.mxu0 0
    %1356 = vmatpush1.bf16.xpose.msra.mxu0 0
    %1357 = vmatprep.subr.bf16.mxu0 0
    %1358 = vmatpush1.bf16.xpose.msra.mxu0 0
    %1359 = vmatprep.subr.bf16.mxu0 0
    %1360 = vmatpush1.bf16.xpose.msra.mxu0 0
    %1361 = vmatprep.subr.bf16.mxu0 0
    %1362 = vmatpush1.bf16.xpose.msra.mxu0 0
    %1363 = vmatprep.subr.bf16.mxu0 0
    %1364 = vmatpush1.bf16.xpose.msra.mxu0 0
    %1365 = vmatprep.subr.bf16.mxu0 0
    %1366 = vmatpush1.bf16.xpose.msra.mxu0 0
    %1367 = vmatprep.subr.bf16.mxu0 0
    %1368 = vmatpush1.bf16.xpose.msra.mxu0 0
    %1369 = vmatprep.subr.bf16.mxu0 0
    %1370 = vmatpush1.bf16.xpose.msra.mxu0 0
    %1371 = vmatprep.subr.bf16.mxu0 0
    %1372 = vmatpush1.bf16.xpose.msra.mxu0 0
    %1373 = vmatprep.subr.bf16.mxu0 0
    %1374 = vmatpush1.bf16.xpose.msra.mxu0 0
    %1375 = vmatprep.subr.bf16.mxu0 0
    %1376 = vmatpush1.bf16.xpose.msra.mxu0 0
    %1377 = vmatprep.subr.bf16.mxu0 0
    %1378 = vmatpush1.bf16.xpose.msra.mxu0 0
    %1379 = vmatprep.mubr.bf16.mxu0 0
    %1380 = vmatmul.mubr.bf16.gmra.mrb[0].mxu0 %v1342
    %v1381 = vpop.f32.mrb[0].mxu0
    %v1382 = vadd.f32 0.0, %v1381
    %v1383 = vpop.f32.mrb[0].mxu0
    %v1384 = vpop.f32.mrb[0].mxu0
    %v1385 = vpop.f32.mrb[0].mxu0
    %1386 = vdwg.mxu0
    %v1387 = vsel %vm351, %v1382, -inf
    %1388 = vmax.xlane.f32.xlu0 %v1387
    %v1389 = vpop.xlane.xlu0 %1388
    %v1390 = vsub.f32 %v1382, %v1389
    %v1391 = vmul.f32 %v1390, 1.442695
    %v1392 = vpow.pop %v1391
    %v1393 = vsel %vm351, %v1392, 0.0
    %1394 = vadd.xlane.f32.xlu0 %v1393
    %v1395 = vpop.xlane.xlu0 %1394
    %v1396 = vrcp.pop %v1395
    %v1397 = vmul.f32 %v1392, %v1396
    %1399 = vrot.lane.b32.xlu0 %v1397, 48
    %v1400 = vpop.permute.xlu0 %1399
    %vm1402 = vcmask 458112
    %1403 = vst.msk [vmem:[#allocation14] sm:$0xff] %vm1402, %v1400
    %v1404 = vpack.c.bf16 %v1397, %v1397
    %1405 = vrot.lane.b32.xlu0 %v1078, 112
    %v1406 = vpop.permute.xlu0 %1405
    %v1408 = vsel %vm351, %v1404, 0
    %v1411 = vsel %vm414, %v1406, 0
    %1413 = vmatprep.subr.bf16.mxu0 0
    %1414 = vmatpush1.bf16.msra.mxu0 %v1411
    %1415 = vmatprep.subr.bf16.mxu0 0
    %1416 = vmatpush1.bf16.msra.mxu0 0
    %1417 = vmatprep.subr.bf16.mxu0 0
    %1418 = vmatpush1.bf16.msra.mxu0 0
    %1419 = vmatprep.subr.bf16.mxu0 0
    %1420 = vmatpush1.bf16.msra.mxu0 0
    %1421 = vmatprep.subr.bf16.mxu0 0
    %1422 = vmatpush1.bf16.msra.mxu0 0
    %1423 = vmatprep.subr.bf16.mxu0 0
    %1424 = vmatpush1.bf16.msra.mxu0 0
    %1425 = vmatprep.subr.bf16.mxu0 0
    %1426 = vmatpush1.bf16.msra.mxu0 0
    %1427 = vmatprep.subr.bf16.mxu0 0
    %1428 = vmatpush1.bf16.msra.mxu0 0
    %1429 = vmatprep.subr.bf16.mxu0 0
    %1430 = vmatpush1.bf16.msra.mxu0 0
    %1431 = vmatprep.subr.bf16.mxu0 0
    %1432 = vmatpush1.bf16.msra.mxu0 0
    %1433 = vmatprep.subr.bf16.mxu0 0
    %1434 = vmatpush1.bf16.msra.mxu0 0
    %1435 = vmatprep.subr.bf16.mxu0 0
    %1436 = vmatpush1.bf16.msra.mxu0 0
    %1437 = vmatprep.subr.bf16.mxu0 0
    %1438 = vmatpush1.bf16.msra.mxu0 0
    %1439 = vmatprep.subr.bf16.mxu0 0
    %1440 = vmatpush1.bf16.msra.mxu0 0
    %1441 = vmatprep.subr.bf16.mxu0 0
    %1442 = vmatpush1.bf16.msra.mxu0 0
    %1443 = vmatprep.subr.bf16.mxu0 0
    %1444 = vmatpush1.bf16.msra.mxu0 0
    %1445 = vmatprep.mubr.bf16.mxu0 0
    %1446 = vmatmul.mubr.bf16.gmra.mrb[0].mxu0 %v1408
    %v1447 = vpop.f32.mrb[0].mxu0
    %v1448 = vadd.f32 0.0, %v1447
    %v1449 = vpop.f32.mrb[0].mxu0
    %v1450 = vpop.f32.mrb[0].mxu0
    %v1451 = vpop.f32.mrb[0].mxu0
    %1452 = vdwg.mxu0
    %v1453 = vpack.c.bf16 %v1448, %v1448
    %v1454 = vld [vmem:[%s9 + $0x8] sm:$0xf]
    %v1456 = vsel %vm351, %v1453, 0
    %v1459 = vsel %vm414, %v1454, 0
    %1461 = vmatprep.subr.bf16.mxu0 0
    %1462 = vmatpush1.bf16.msra.mxu0 %v1459
    %1463 = vmatprep.subr.bf16.mxu0 0
    %1464 = vmatpush1.bf16.msra.mxu0 0
    %1465 = vmatprep.subr.bf16.mxu0 0
    %1466 = vmatpush1.bf16.msra.mxu0 0
    %1467 = vmatprep.subr.bf16.mxu0 0
    %1468 = vmatpush1.bf16.msra.mxu0 0
    %1469 = vmatprep.subr.bf16.mxu0 0
    %1470 = vmatpush1.bf16.msra.mxu0 0
    %1471 = vmatprep.subr.bf16.mxu0 0
    %1472 = vmatpush1.bf16.msra.mxu0 0
    %1473 = vmatprep.subr.bf16.mxu0 0
    %1474 = vmatpush1.bf16.msra.mxu0 0
    %1475 = vmatprep.subr.bf16.mxu0 0
    %1476 = vmatpush1.bf16.msra.mxu0 0
    %1477 = vmatprep.subr.bf16.mxu0 0
    %1478 = vmatpush1.bf16.msra.mxu0 0
    %1479 = vmatprep.subr.bf16.mxu0 0
    %1480 = vmatpush1.bf16.msra.mxu0 0
    %1481 = vmatprep.subr.bf16.mxu0 0
    %1482 = vmatpush1.bf16.msra.mxu0 0
    %1483 = vmatprep.subr.bf16.mxu0 0
    %1484 = vmatpush1.bf16.msra.mxu0 0
    %1485 = vmatprep.subr.bf16.mxu0 0
    %1486 = vmatpush1.bf16.msra.mxu0 0
    %1487 = vmatprep.subr.bf16.mxu0 0
    %1488 = vmatpush1.bf16.msra.mxu0 0
    %1489 = vmatprep.subr.bf16.mxu0 0
    %1490 = vmatpush1.bf16.msra.mxu0 0
    %1491 = vmatprep.subr.bf16.mxu0 0
    %1492 = vmatpush1.bf16.msra.mxu0 0
    %1493 = vmatprep.mubr.bf16.mxu0 0
    %1494 = vmatmul.mubr.bf16.gmra.mrb[0].mxu0 %v1456
    %v1495 = vpop.f32.mrb[0].mxu0
    %v1496 = vadd.f32 0.0, %v1495
    %v1497 = vpop.f32.mrb[0].mxu0
    %v1498 = vpop.f32.mrb[0].mxu0
    %v1499 = vpop.f32.mrb[0].mxu0
    %1500 = vdwg.mxu0
    %v1501 = vadd.f32 %v1332, %v1496
    %1502 = vrot.lane.b32.xlu0 %v1012, 104
    %v1503 = vpop.permute.xlu0 %1502
    %1504 = vrot.lane.b32.xlu0 %v1013, 104
    %v1505 = vpop.permute.xlu0 %1504
    %v1507 = vsel %vm351, %v1503, 0
    %v1510 = vsel %vm351, %v1505, 0
    %1512 = vmatprep.subr.bf16.mxu0 0
    %1513 = vmatpush1.bf16.xpose.msra.mxu0 %v1510
    %1514 = vmatprep.subr.bf16.mxu0 0
    %1515 = vmatpush1.bf16.xpose.msra.mxu0 0
    %1516 = vmatprep.subr.bf16.mxu0 0
    %1517 = vmatpush1.bf16.xpose.msra.mxu0 0
    %1518 = vmatprep.subr.bf16.mxu0 0
    %1519 = vmatpush1.bf16.xpose.msra.mxu0 0
    %1520 = vmatprep.subr.bf16.mxu0 0
    %1521 = vmatpush1.bf16.xpose.msra.mxu0 0
    %1522 = vmatprep.subr.bf16.mxu0 0
    %1523 = vmatpush1.bf16.xpose.msra.mxu0 0
    %1524 = vmatprep.subr.bf16.mxu0 0
    %1525 = vmatpush1.bf16.xpose.msra.mxu0 0
    %1526 = vmatprep.subr.bf16.mxu0 0
    %1527 = vmatpush1.bf16.xpose.msra.mxu0 0
    %1528 = vmatprep.subr.bf16.mxu0 0
    %1529 = vmatpush1.bf16.xpose.msra.mxu0 0
    %1530 = vmatprep.subr.bf16.mxu0 0
    %1531 = vmatpush1.bf16.xpose.msra.mxu0 0
    %1532 = vmatprep.subr.bf16.mxu0 0
    %1533 = vmatpush1.bf16.xpose.msra.mxu0 0
    %1534 = vmatprep.subr.bf16.mxu0 0
    %1535 = vmatpush1.bf16.xpose.msra.mxu0 0
    %1536 = vmatprep.subr.bf16.mxu0 0
    %1537 = vmatpush1.bf16.xpose.msra.mxu0 0
    %1538 = vmatprep.subr.bf16.mxu0 0
    %1539 = vmatpush1.bf16.xpose.msra.mxu0 0
    %1540 = vmatprep.subr.bf16.mxu0 0
    %1541 = vmatpush1.bf16.xpose.msra.mxu0 0
    %1542 = vmatprep.subr.bf16.mxu0 0
    %1543 = vmatpush1.bf16.xpose.msra.mxu0 0
    %1544 = vmatprep.mubr.bf16.mxu0 0
    %1545 = vmatmul.mubr.bf16.gmra.mrb[0].mxu0 %v1507
    %v1546 = vpop.f32.mrb[0].mxu0
    %v1547 = vadd.f32 0.0, %v1546
    %v1548 = vpop.f32.mrb[0].mxu0
    %v1549 = vpop.f32.mrb[0].mxu0
    %v1550 = vpop.f32.mrb[0].mxu0
    %1551 = vdwg.mxu0
    %v1552 = vsel %vm351, %v1547, -inf
    %1553 = vmax.xlane.f32.xlu0 %v1552
    %v1554 = vpop.xlane.xlu0 %1553
    %v1555 = vsub.f32 %v1547, %v1554
    %v1556 = vmul.f32 %v1555, 1.442695
    %v1557 = vpow.pop %v1556
    %v1558 = vsel %vm351, %v1557, 0.0
    %1559 = vadd.xlane.f32.xlu0 %v1558
    %v1560 = vpop.xlane.xlu0 %1559
    %v1561 = vrcp.pop %v1560
    %v1562 = vmul.f32 %v1557, %v1561
    %1564 = vrot.lane.b32.xlu0 %v1562, 56
    %v1565 = vpop.permute.xlu0 %1564
    %vm1567 = vcmask 523712
    %1568 = vst.msk [vmem:[#allocation14] sm:$0xff] %vm1567, %v1565
    %v1569 = vpack.c.bf16 %v1562, %v1562
    %1570 = vrot.lane.b32.xlu0 %v1078, 104
    %v1571 = vpop.permute.xlu0 %1570
    %v1573 = vsel %vm351, %v1569, 0
    %v1576 = vsel %vm414, %v1571, 0
    %1578 = vmatprep.subr.bf16.mxu0 0
    %1579 = vmatpush1.bf16.msra.mxu0 %v1576
    %1580 = vmatprep.subr.bf16.mxu0 0
    %1581 = vmatpush1.bf16.msra.mxu0 0
    %1582 = vmatprep.subr.bf16.mxu0 0
    %1583 = vmatpush1.bf16.msra.mxu0 0
    %1584 = vmatprep.subr.bf16.mxu0 0
    %1585 = vmatpush1.bf16.msra.mxu0 0
    %1586 = vmatprep.subr.bf16.mxu0 0
    %1587 = vmatpush1.bf16.msra.mxu0 0
    %1588 = vmatprep.subr.bf16.mxu0 0
    %1589 = vmatpush1.bf16.msra.mxu0 0
    %1590 = vmatprep.subr.bf16.mxu0 0
    %1591 = vmatpush1.bf16.msra.mxu0 0
    %1592 = vmatprep.subr.bf16.mxu0 0
    %1593 = vmatpush1.bf16.msra.mxu0 0
    %1594 = vmatprep.subr.bf16.mxu0 0
    %1595 = vmatpush1.bf16.msra.mxu0 0
    %1596 = vmatprep.subr.bf16.mxu0 0
    %1597 = vmatpush1.bf16.msra.mxu0 0
    %1598 = vmatprep.subr.bf16.mxu0 0
    %1599 = vmatpush1.bf16.msra.mxu0 0
    %1600 = vmatprep.subr.bf16.mxu0 0
    %1601 = vmatpush1.bf16.msra.mxu0 0
    %1602 = vmatprep.subr.bf16.mxu0 0
    %1603 = vmatpush1.bf16.msra.mxu0 0
    %1604 = vmatprep.subr.bf16.mxu0 0
    %1605 = vmatpush1.bf16.msra.mxu0 0
    %1606 = vmatprep.subr.bf16.mxu0 0
    %1607 = vmatpush1.bf16.msra.mxu0 0
    %1608 = vmatprep.subr.bf16.mxu0 0
    %1609 = vmatpush1.bf16.msra.mxu0 0
    %1610 = vmatprep.mubr.bf16.mxu0 0
    %1611 = vmatmul.mubr.bf16.gmra.mrb[0].mxu0 %v1573
    %v1612 = vpop.f32.mrb[0].mxu0
    %v1613 = vadd.f32 0.0, %v1612
    %v1614 = vpop.f32.mrb[0].mxu0
    %v1615 = vpop.f32.mrb[0].mxu0
    %v1616 = vpop.f32.mrb[0].mxu0
    %1617 = vdwg.mxu0
    %v1618 = vpack.c.bf16 %v1613, %v1613
    %v1619 = vld [vmem:[%s9 + $0xc] sm:$0xf]
    %v1621 = vsel %vm351, %v1618, 0
    %v1624 = vsel %vm414, %v1619, 0
    %1626 = vmatprep.subr.bf16.mxu0 0
    %1627 = vmatpush1.bf16.msra.mxu0 %v1624
    %1628 = vmatprep.subr.bf16.mxu0 0
    %1629 = vmatpush1.bf16.msra.mxu0 0
    %1630 = vmatprep.subr.bf16.mxu0 0
    %1631 = vmatpush1.bf16.msra.mxu0 0
    %1632 = vmatprep.subr.bf16.mxu0 0
    %1633 = vmatpush1.bf16.msra.mxu0 0
    %1634 = vmatprep.subr.bf16.mxu0 0
    %1635 = vmatpush1.bf16.msra.mxu0 0
    %1636 = vmatprep.subr.bf16.mxu0 0
    %1637 = vmatpush1.bf16.msra.mxu0 0
    %1638 = vmatprep.subr.bf16.mxu0 0
    %1639 = vmatpush1.bf16.msra.mxu0 0
    %1640 = vmatprep.subr.bf16.mxu0 0
    %1641 = vmatpush1.bf16.msra.mxu0 0
    %1642 = vmatprep.subr.bf16.mxu0 0
    %1643 = vmatpush1.bf16.msra.mxu0 0
    %1644 = vmatprep.subr.bf16.mxu0 0
    %1645 = vmatpush1.bf16.msra.mxu0 0
    %1646 = vmatprep.subr.bf16.mxu0 0
    %1647 = vmatpush1.bf16.msra.mxu0 0
    %1648 = vmatprep.subr.bf16.mxu0 0
    %1649 = vmatpush1.bf16.msra.mxu0 0
    %1650 = vmatprep.subr.bf16.mxu0 0
    %1651 = vmatpush1.bf16.msra.mxu0 0
    %1652 = vmatprep.subr.bf16.mxu0 0
    %1653 = vmatpush1.bf16.msra.mxu0 0
    %1654 = vmatprep.subr.bf16.mxu0 0
    %1655 = vmatpush1.bf16.msra.mxu0 0
    %1656 = vmatprep.subr.bf16.mxu0 0
    %1657 = vmatpush1.bf16.msra.mxu0 0
    %1658 = vmatprep.mubr.bf16.mxu0 0
    %1659 = vmatmul.mubr.bf16.gmra.mrb[0].mxu0 %v1621
    %v1660 = vpop.f32.mrb[0].mxu0
    %v1661 = vadd.f32 0.0, %v1660
    %v1662 = vpop.f32.mrb[0].mxu0
    %v1663 = vpop.f32.mrb[0].mxu0
    %v1664 = vpop.f32.mrb[0].mxu0
    %1665 = vdwg.mxu0
    %v1666 = vadd.f32 %v1501, %v1661
    %v1667 = vld [vmem:[%s10] sm:$0x1]
    %v1669 = vlaneseq
    %v1670 = vshrl.u32 %v1669, 7
    %v1671 = vsub.s32 0, %v1670
    %v1672 = vrot.slane %v1667, %v1671
    %v1674 = vadd.f32 %v1666, %v1672
    %1675 = vst.msk [vmem:[#allocation13 + $0x8] sm:$0xff] %vm153, %v1674
    // Predicated region
    $region70: #{tpu_custom_call.1} parent=1 // pred_check
      _
    $region71: #{tpu_custom_call.1} parent=1 // pred_check_branch
      %1677 = sbr.rel (0) target = $region73
    $region72: #{tpu_custom_call.1} parent=1 // pred_region
      %s1679 = ssub.s32 256, 256
      %1680 = vsyncadd [#allocation4], %s1679
      %s1681 = sshll.u32 [#allocation13], 4
      %s1682 = int_to_ptr.vmem [resolvable:$true] %s1681
      %1687 = dma.vmem_to_hbm [thread:$0]  %s1682, 256, %s11, [#allocation4], 128, 128, 8
    $region73: #{tpu_custom_call.1} parent=1 // pred_fallthru
      _
    // Predicated region
    $region74: #{tpu_custom_call.1} parent=1 // pred_check
      _
    $region75: #{tpu_custom_call.1} parent=1 // pred_check_branch
      %1689 = sbr.rel (0) target = $region77
    $region76: #{tpu_custom_call.1} parent=1 // pred_region
      %s1691 = ssub.s32 128, 128
      %1692 = vsyncadd [#allocation15], %s1691
      %s1694 = sshll.u32 [#allocation14], 4
      %s1695 = int_to_ptr.vmem [resolvable:$true] %s1694
      %1697 = dma.vmem_to_hbm [thread:$0]  %s1695, 128, %s12, [#allocation15]
    $region77: #{tpu_custom_call.1} parent=1 // pred_fallthru
      _
    // Predicated region
    $region78: #{tpu_custom_call.1} parent=1 // pred_check
      _
    $region79: #{tpu_custom_call.1} parent=1 // pred_check_branch
      %1699 = sbr.rel (0) target = $region81
    $region80: #{tpu_custom_call.1} parent=1 // pred_region
      %1700 = dma.done [#allocation4], 256
    $region81: #{tpu_custom_call.1} parent=1 // pred_fallthru
      _
    // Predicated region
    $region82: #{tpu_custom_call.1} parent=1 // pred_check
      _
    $region83: #{tpu_custom_call.1} parent=1 // pred_check_branch
      %1702 = sbr.rel (0) target = $region85
    $region84: #{tpu_custom_call.1} parent=1 // pred_region
      %1703 = dma.done [#allocation15], 128
    $region85: #{tpu_custom_call.1} parent=1 // pred_fallthru
      _
    %1704 = vsyncpa [#allocation3], 1
    %1705 = vsyncpa [#allocation6], 1
    %1706 = vsyncpa [#allocation9], 1
    %1707 = vsyncpa [#allocation12], 1
    %1708 = vsyncpa [#allocation4], 1
    %1709 = vsyncpa [#allocation15], 1

</llo_original>
